<compile_context>
chip_gen: v5e
topology: v5e:2x2
jax: 0.10.0
libtpu: 0.0.40
codegen_flags: <defaults>
</compile_context>

<pallas_src>
import jax
import jax.numpy as jnp
from jax.experimental import pallas as pl
from jax.experimental.pallas import tpu as pltpu

# ----------------------------- configuration --------------------------------
D_MODEL = 32            # args.d_model
NUM_HEADS = 4
HEAD_DIM = D_MODEL // NUM_HEADS
D_FF = 64
NUM_LAYERS = 2
VOCAB = 100             # valid token ids are < VOCAB
VOCAB_PAD = 128         # token table padded to 128 rows (lane-aligned one-hot matmul)
MAX_SEQ = 8
NUM_CLASSES = 2         # C = 2
BATCH = 2
BS = BATCH * MAX_SEQ    # 16 rows processed as one slab
SEQ_SHIFT = MAX_SEQ.bit_length() - 1
assert 1 << SEQ_SHIFT == MAX_SEQ, "MAX_SEQ must be a power of two"
NEG_INF = -1e9

# packed-slab geometry
W_IN_COLS = 3 * D_MODEL + D_MODEL + D_FF     # [wqkv | wo | w1] -> 96 + 32 + 64 = 192
BIAS_W = 128                                 # bias/LN slab lane width
HEAD_ROWS = 40                               # classifier slab rows (32 wc + 1 bc + pad)
OUT_ROWS = 8                                 # padded output rows (store is unmasked)
OUT_COLS = 128                               # padded output lanes


# ------------------------------ Pallas kernel --------------------------------
def _layer_norm(x, g, b, eps=1e-12):
    # eps=1e-12 matches HuggingFace BERT (torch.nn.LayerNorm default is 1e-5).
    mu = jnp.mean(x, axis=-1, keepdims=True)
    var = jnp.mean(jnp.square(x - mu), axis=-1, keepdims=True)
    return (x - mu) * jax.lax.rsqrt(var + eps) * g + b


def fused_forward_kernel(ids_ref, emb_ref, w_in_ref, w2_ref, bias_ref, head_ref,
                         out_ref):
    f32, bf16 = jnp.float32, jnp.bfloat16

    # ---------------- embeddings (in-kernel one-hot gather) -----------------
    ids = ids_ref[...]                                               # [BS, 1] int32
    vocab_iota = jax.lax.broadcasted_iota(jnp.int32, (BS, VOCAB_PAD), 1)
    one_hot = jnp.where(vocab_iota == ids, 1.0, 0.0).astype(bf16)    # [BS, VOCAB_PAD]
    x = jnp.dot(one_hot, emb_ref[0:VOCAB_PAD, :],                    # token table
                preferred_element_type=f32)                          # [BS, D] f32
    # pre-tiled (pos_emb + seg_emb[1]) rows; segment_ids == 1 everywhere
    x = x + emb_ref[VOCAB_PAD:VOCAB_PAD + BS, :].astype(f32)

    # block-diagonal mask: row b*S+s attends only within its own batch element
    row_b = jax.lax.shift_right_logical(
        jax.lax.broadcasted_iota(jnp.int32, (BS, BS), 0), SEQ_SHIFT)
    col_b = jax.lax.shift_right_logical(
        jax.lax.broadcasted_iota(jnp.int32, (BS, BS), 1), SEQ_SHIFT)
    attn_mask = jnp.where(row_b == col_b, 0.0, NEG_INF)              # [BS, BS] f32

    scale = 1.0 / (HEAD_DIM ** 0.5)

    for l in range(NUM_LAYERS):                                      # static unroll
        wsl = w_in_ref[l]                                            # [D, 192] bf16
        wqkv = wsl[:, 0:3 * D_MODEL]
        wo = wsl[:, 3 * D_MODEL:4 * D_MODEL]
        w1 = wsl[:, 4 * D_MODEL:4 * D_MODEL + D_FF]

        bsl = bias_ref[l]                                            # [8, 128] f32
        bqkv = bsl[0:1, 0:3 * D_MODEL]
        bo = bsl[1:2, 0:D_MODEL]
        bf1 = bsl[2:3, 0:D_FF]
        bf2 = bsl[3:4, 0:D_MODEL]
        g1, b1 = bsl[4:5, 0:D_MODEL], bsl[5:6, 0:D_MODEL]
        g2, b2 = bsl[6:7, 0:D_MODEL], bsl[7:8, 0:D_MODEL]

        # fused QKV projection for the full batch slab (single wide MXU push)
        qkv = jnp.dot(x.astype(bf16), wqkv,
                      preferred_element_type=f32) + bqkv             # [BS, 3D] f32

        attn = jnp.zeros((BS, D_MODEL), f32)
        for h in range(NUM_HEADS):                                   # static unroll
            o = h * HEAD_DIM
            qh = qkv[:, o:o + HEAD_DIM].astype(bf16)
            kh = qkv[:, D_MODEL + o:D_MODEL + o + HEAD_DIM].astype(bf16)
            vh = qkv[:, 2 * D_MODEL + o:2 * D_MODEL + o + HEAD_DIM].astype(bf16)

            s = jax.lax.dot_general(qh, kh, (((1,), (1,)), ((), ())),
                                    preferred_element_type=f32)      # [BS, BS] f32
            s = s * scale + attn_mask
            s = s - jnp.max(s, axis=-1, keepdims=True)               # stable softmax
            p = jnp.exp(s)
            p = p * pl.reciprocal(jnp.sum(p, axis=-1, keepdims=True), approx=True)

            # W_O folded into the head loop: sublane-aligned row slice of wo,
            # accumulate on the (idle) MXU — no masked 8-lane scratch writes.
            vwo = jnp.dot(vh, wo[o:o + HEAD_DIM, :],
                          preferred_element_type=f32)                # [BS, D]
            attn = attn + jnp.dot(p.astype(bf16), vwo.astype(bf16),
                                  preferred_element_type=f32)
        attn = attn + bo

        h1 = _layer_norm(x + attn, g1, b1)

        ff = jnp.dot(h1.astype(bf16), w1, preferred_element_type=f32) + bf1
        # TODO(synk): exact erf GELU (PyTorch nn.GELU default) if bit-parity
        #             with a real torch BERT matters; tanh approximation used.
        ff = jax.nn.gelu(ff)
        ff = jnp.dot(ff.astype(bf16), w2_ref[l], preferred_element_type=f32) + bf2
        x = _layer_norm(h1 + ff, g2, b2)

    # ------------- CLS rows -> tanh -> Linear(d_model, C) -------------------
    # classifier on the full [BS, D] slab, then a constant one-hot selection
    # matmul picks the CLS row of each batch element (no sublane gathers).
    wc = head_ref[0:D_MODEL, :]                                      # [D, 128] bf16
    bc = head_ref[D_MODEL:D_MODEL + 1, :].astype(f32)                # [1, 128]
    logits_all = jnp.dot(jnp.tanh(x).astype(bf16), wc,
                         preferred_element_type=f32)                 # [BS, 128]
    r = jax.lax.broadcasted_iota(jnp.int32, (OUT_ROWS, BS), 0)
    c = jax.lax.broadcasted_iota(jnp.int32, (OUT_ROWS, BS), 1)
    sel = jnp.where(c == r * MAX_SEQ, 1.0, 0.0)                      # [8, BS] f32
    out_ref[...] = jnp.dot(sel, logits_all,
                           preferred_element_type=f32) + bc          # unmasked [8,128] store


# -------------------------------- wrapper ------------------------------------
def _full_spec(a):
    nd = a.ndim
    return pl.BlockSpec(a.shape, lambda i, _nd=nd: (0,) * _nd)


def classification_model_forward(params, input_ids):
    """Equivalent of classification_model.forward(input) — one pallas_call."""
    B, S = input_ids.shape
    assert B == BATCH and S == MAX_SEQ
    ids2d = input_ids.reshape(B * S, 1).astype(jnp.int32)            # host-side glue
    args = [ids2d, params["emb"], params["w_in"], params["w2"],
            params["bias"], params["head"]]
    out = pl.pallas_call(
        fused_forward_kernel,
        grid=(1,),
        in_specs=[_full_spec(a) for a in args],
        out_specs=pl.BlockSpec((OUT_ROWS, OUT_COLS), lambda i: (0, 0)),
        out_shape=jax.ShapeDtypeStruct((OUT_ROWS, OUT_COLS), jnp.float32),
        compiler_params=pltpu.CompilerParams(
            dimension_semantics=("arbitrary",)),                     # single step
    )(*args)
    return out[:B, :NUM_CLASSES]                                     # strip lane/row padding


# --------------------------- parameter construction --------------------------
def init_params(key):
    def nrm(k, shape, scale=0.02):
        return scale * jax.random.normal(k, shape, dtype=jnp.float32)

    keys = jax.random.split(key, 8)

    # embeddings: rows >= VOCAB of the token table are padding (ids < VOCAB).
    tok = nrm(keys[0], (VOCAB_PAD, D_MODEL))
    seg = nrm(keys[1], (2, D_MODEL))
    pos = nrm(keys[2], (MAX_SEQ, D_MODEL))
    # segment_ids == ones_like(input) in the module forward -> fold seg row 1
    # into the pre-tiled positional rows.
    statemb = jnp.tile(pos, (BATCH, 1)) + seg[1:2, :]                # [BS, D]
    emb = jnp.concatenate([tok, statemb], axis=0).astype(jnp.bfloat16)  # [144, D]

    # per-layer weights sharing the D-row dim packed as [wqkv | wo | w1]
    wqkv = nrm(keys[3], (NUM_LAYERS, D_MODEL, 3 * D_MODEL))
    wo = nrm(keys[4], (NUM_LAYERS, D_MODEL, D_MODEL))
    w1 = nrm(keys[5], (NUM_LAYERS, D_MODEL, D_FF))
    w_in = jnp.concatenate([wqkv, wo, w1], axis=-1).astype(jnp.bfloat16)  # [L, D, 192]
    w2 = nrm(keys[6], (NUM_LAYERS, D_FF, D_MODEL)).astype(jnp.bfloat16)   # [L, D_FF, D]

    # bias / LN slab rows: 0 bqkv, 1 bo, 2 bf1, 3 bf2, 4 g1, 5 beta1, 6 g2, 7 beta2
    bias = jnp.zeros((NUM_LAYERS, 8, BIAS_W), jnp.float32)
    bias = bias.at[:, 4, :D_MODEL].set(1.0)
    bias = bias.at[:, 6, :D_MODEL].set(1.0)

    # classifier slab: rows 0..31 = wc [D, C] lane-padded to 128, row 32 = bc
    wc = nrm(keys[7], (D_MODEL, NUM_CLASSES))
    head = jnp.zeros((HEAD_ROWS, OUT_COLS), jnp.float32)
    head = head.at[:D_MODEL, :NUM_CLASSES].set(wc)
    head = head.astype(jnp.bfloat16)

    return {"emb": emb, "w_in": w_in, "w2": w2, "bias": bias, "head": head}


# ----------------------------------- main -------------------------------------
if __name__ == "__main__":
    key = jax.random.PRNGKey(0)
    pkey, dkey = jax.random.split(key)
    params = init_params(pkey)

    input_ids = jax.random.randint(dkey, (BATCH, MAX_SEQ), 0, VOCAB,
                                   dtype=jnp.int32)                  # [2, 8]

    logits = classification_model_forward(params, input_ids)
    jax.block_until_ready(logits)

    assert logits.shape == (BATCH, NUM_CLASSES)
    assert logits.dtype == jnp.float32
    assert bool(jnp.all(jnp.isfinite(logits)))
    print("KERNEL_OK")
</pallas_src>

<mosaic_0001>
module attributes {stable_mosaic.version = 11 : i64} {
  func.func @fused_forward_kernel(%arg0: i32, %arg1: memref<16x1xi32, #tpu.memory_space<vmem>>, %arg2: memref<144x32xbf16, #tpu.memory_space<vmem>>, %arg3: memref<2x32x192xbf16, #tpu.memory_space<vmem>>, %arg4: memref<2x64x32xbf16, #tpu.memory_space<vmem>>, %arg5: memref<2x8x128xf32, #tpu.memory_space<vmem>>, %arg6: memref<40x128xbf16, #tpu.memory_space<vmem>>, %arg7: memref<8x128xf32, #tpu.memory_space<vmem>>) attributes {dimension_semantics = [#tpu.dimension_semantics<arbitrary>], iteration_bounds = array<i64: 1>, scalar_prefetch = 0 : i64, scratch_operands = 0 : i64, tpu.core_type = #tpu.core_type<tc>, window_params = [{pipeline_mode = #tpu.pipeline_mode<synchronous>, transform_indices = @transform_0, window_bounds = array<i64: 16, 1>}, {pipeline_mode = #tpu.pipeline_mode<synchronous>, transform_indices = @transform_1, window_bounds = array<i64: 144, 32>}, {pipeline_mode = #tpu.pipeline_mode<synchronous>, transform_indices = @transform_2, window_bounds = array<i64: 2, 32, 192>}, {pipeline_mode = #tpu.pipeline_mode<synchronous>, transform_indices = @transform_3, window_bounds = array<i64: 2, 64, 32>}, {pipeline_mode = #tpu.pipeline_mode<synchronous>, transform_indices = @transform_4, window_bounds = array<i64: 2, 8, 128>}, {pipeline_mode = #tpu.pipeline_mode<synchronous>, transform_indices = @transform_5, window_bounds = array<i64: 40, 128>}, {pipeline_mode = #tpu.pipeline_mode<synchronous>, transform_indices = @transform_6, window_bounds = array<i64: 8, 128>}]} {
    %c0 = arith.constant 0 : index
    %c0_0 = arith.constant 0 : index
    %0 = vector.load %arg1[%c0, %c0_0] : memref<16x1xi32, #tpu.memory_space<vmem>>, vector<16x1xi32>
    %1 = tpu.iota {dimensions = array<i32: 1>} : vector<16x128xi32>
    %2 = vector.broadcast %0 : vector<16x1xi32> to vector<16x128xi32>
    %3 = arith.cmpi eq, %1, %2 : vector<16x128xi32>
    %cst = arith.constant 1.000000e+00 : f32
    %cst_1 = arith.constant 0.000000e+00 : f32
    %4 = vector.broadcast %cst : f32 to vector<16x128xf32>
    %5 = vector.broadcast %cst_1 : f32 to vector<16x128xf32>
    %6 = arith.select %3, %4, %5 : vector<16x128xi1>, vector<16x128xf32>
    %7 = arith.truncf %6 : vector<16x128xf32> to vector<16x128xbf16>
    %c0_2 = arith.constant 0 : index
    %c0_3 = arith.constant 0 : index
    %8 = vector.load %arg2[%c0_2, %c0_3] : memref<144x32xbf16, #tpu.memory_space<vmem>>, vector<128x32xbf16>
    %cst_4 = arith.constant dense<0.000000e+00> : vector<16x32xf32>
    %9 = tpu.matmul %7, %8, %cst_4 {dimension_numbers = #tpu.dot_dimension_numbers<[1], [0], [0], [1], [0, 0, 1, 1], [], []>} : vector<16x128xbf16>, vector<128x32xbf16>, vector<16x32xf32> -> vector<16x32xf32>
    %c128 = arith.constant 128 : index
    %c0_5 = arith.constant 0 : index
    %10 = vector.load %arg2[%c128, %c0_5] : memref<144x32xbf16, #tpu.memory_space<vmem>>, vector<16x32xbf16>
    %11 = arith.extf %10 : vector<16x32xbf16> to vector<16x32xf32>
    %12 = arith.addf %9, %11 : vector<16x32xf32>
    %13 = tpu.iota {dimensions = array<i32: 0>} : vector<16x16xi32>
    %c3_i32 = arith.constant 3 : i32
    %14 = vector.broadcast %c3_i32 : i32 to vector<16x16xi32>
    %15 = arith.shrui %13, %14 : vector<16x16xi32>
    %16 = tpu.iota {dimensions = array<i32: 1>} : vector<16x16xi32>
    %c3_i32_6 = arith.constant 3 : i32
    %17 = vector.broadcast %c3_i32_6 : i32 to vector<16x16xi32>
    %18 = arith.shrui %16, %17 : vector<16x16xi32>
    %19 = arith.cmpi eq, %15, %18 : vector<16x16xi32>
    %cst_7 = arith.constant 0.000000e+00 : f32
    %cst_8 = arith.constant -1.000000e+09 : f32
    %20 = vector.broadcast %cst_7 : f32 to vector<16x16xf32>
    %21 = vector.broadcast %cst_8 : f32 to vector<16x16xf32>
    %22 = arith.select %19, %20, %21 : vector<16x16xi1>, vector<16x16xf32>
    %c0_9 = arith.constant 0 : index
    %c0_10 = arith.constant 0 : index
    %c0_11 = arith.constant 0 : index
    %23 = vector.load %arg3[%c0_9, %c0_10, %c0_11] : memref<2x32x192xbf16, #tpu.memory_space<vmem>>, vector<1x32x192xbf16>
    %24 = vector.shape_cast %23 : vector<1x32x192xbf16> to vector<32x192xbf16>
    %25 = vector.extract_strided_slice %24 {offsets = [0, 0], sizes = [32, 96], strides = [1, 1]} : vector<32x192xbf16> to vector<32x96xbf16>
    %26 = vector.extract_strided_slice %24 {offsets = [0, 96], sizes = [32, 32], strides = [1, 1]} : vector<32x192xbf16> to vector<32x32xbf16>
    %27 = vector.extract_strided_slice %24 {offsets = [0, 128], sizes = [32, 64], strides = [1, 1]} : vector<32x192xbf16> to vector<32x64xbf16>
    %c0_12 = arith.constant 0 : index
    %c0_13 = arith.constant 0 : index
    %c0_14 = arith.constant 0 : index
    %28 = vector.load %arg5[%c0_12, %c0_13, %c0_14] : memref<2x8x128xf32, #tpu.memory_space<vmem>>, vector<1x8x128xf32>
    %29 = vector.shape_cast %28 : vector<1x8x128xf32> to vector<8x128xf32>
    %30 = vector.extract_strided_slice %29 {offsets = [0, 0], sizes = [1, 96], strides = [1, 1]} : vector<8x128xf32> to vector<1x96xf32>
    %31 = vector.extract_strided_slice %29 {offsets = [1, 0], sizes = [1, 32], strides = [1, 1]} : vector<8x128xf32> to vector<1x32xf32>
    %32 = vector.extract_strided_slice %29 {offsets = [2, 0], sizes = [1, 64], strides = [1, 1]} : vector<8x128xf32> to vector<1x64xf32>
    %33 = vector.extract_strided_slice %29 {offsets = [3, 0], sizes = [1, 32], strides = [1, 1]} : vector<8x128xf32> to vector<1x32xf32>
    %34 = vector.extract_strided_slice %29 {offsets = [4, 0], sizes = [1, 32], strides = [1, 1]} : vector<8x128xf32> to vector<1x32xf32>
    %35 = vector.extract_strided_slice %29 {offsets = [5, 0], sizes = [1, 32], strides = [1, 1]} : vector<8x128xf32> to vector<1x32xf32>
    %36 = vector.extract_strided_slice %29 {offsets = [6, 0], sizes = [1, 32], strides = [1, 1]} : vector<8x128xf32> to vector<1x32xf32>
    %37 = vector.extract_strided_slice %29 {offsets = [7, 0], sizes = [1, 32], strides = [1, 1]} : vector<8x128xf32> to vector<1x32xf32>
    %38 = arith.truncf %12 : vector<16x32xf32> to vector<16x32xbf16>
    %cst_15 = arith.constant dense<0.000000e+00> : vector<16x96xf32>
    %39 = tpu.matmul %38, %25, %cst_15 {dimension_numbers = #tpu.dot_dimension_numbers<[1], [0], [0], [1], [0, 0, 1, 1], [], []>} : vector<16x32xbf16>, vector<32x96xbf16>, vector<16x96xf32> -> vector<16x96xf32>
    %40 = vector.broadcast %30 : vector<1x96xf32> to vector<16x96xf32>
    %41 = arith.addf %39, %40 : vector<16x96xf32>
    %cst_16 = arith.constant 0.000000e+00 : f32
    %42 = vector.broadcast %cst_16 : f32 to vector<16x32xf32>
    %43 = vector.extract_strided_slice %41 {offsets = [0, 0], sizes = [16, 8], strides = [1, 1]} : vector<16x96xf32> to vector<16x8xf32>
    %44 = arith.truncf %43 : vector<16x8xf32> to vector<16x8xbf16>
    %45 = vector.extract_strided_slice %41 {offsets = [0, 32], sizes = [16, 8], strides = [1, 1]} : vector<16x96xf32> to vector<16x8xf32>
    %46 = arith.truncf %45 : vector<16x8xf32> to vector<16x8xbf16>
    %47 = vector.extract_strided_slice %41 {offsets = [0, 64], sizes = [16, 8], strides = [1, 1]} : vector<16x96xf32> to vector<16x8xf32>
    %48 = arith.truncf %47 : vector<16x8xf32> to vector<16x8xbf16>
    %cst_17 = arith.constant dense<0.000000e+00> : vector<16x16xf32>
    %49 = tpu.matmul %44, %46, %cst_17 {dimension_numbers = #tpu.dot_dimension_numbers<[1], [1], [0], [0], [0, 0, 1, 0], [], []>} : vector<16x8xbf16>, vector<16x8xbf16>, vector<16x16xf32> -> vector<16x16xf32>
    %cst_18 = arith.constant 0.353553385 : f32
    %50 = vector.broadcast %cst_18 : f32 to vector<16x16xf32>
    %51 = arith.mulf %49, %50 : vector<16x16xf32>
    %52 = arith.addf %51, %22 : vector<16x16xf32>
    %cst_19 = arith.constant dense<0xFF800000> : vector<16xf32>
    %53 = vector.multi_reduction <maximumf>, %52, %cst_19 [1] : vector<16x16xf32> to vector<16xf32>
    %54 = vector.shape_cast %53 : vector<16xf32> to vector<16x1xf32>
    %55 = vector.broadcast %54 : vector<16x1xf32> to vector<16x16xf32>
    %56 = arith.subf %52, %55 : vector<16x16xf32>
    %57 = math.exp %56 : vector<16x16xf32>
    %cst_20 = arith.constant dense<0.000000e+00> : vector<16xf32>
    %58 = vector.multi_reduction <add>, %57, %cst_20 [1] : vector<16x16xf32> to vector<16xf32>
    %59 = vector.shape_cast %58 : vector<16xf32> to vector<16x1xf32>
    %60 = tpu.reciprocal %59 {approx = true} : vector<16x1xf32> -> vector<16x1xf32>
    %61 = vector.broadcast %60 : vector<16x1xf32> to vector<16x16xf32>
    %62 = arith.mulf %57, %61 : vector<16x16xf32>
    %63 = vector.extract_strided_slice %26 {offsets = [0, 0], sizes = [8, 32], strides = [1, 1]} : vector<32x32xbf16> to vector<8x32xbf16>
    %cst_21 = arith.constant dense<0.000000e+00> : vector<16x32xf32>
    %64 = tpu.matmul %48, %63, %cst_21 {dimension_numbers = #tpu.dot_dimension_numbers<[1], [0], [0], [1], [0, 0, 1, 1], [], []>} : vector<16x8xbf16>, vector<8x32xbf16>, vector<16x32xf32> -> vector<16x32xf32>
    %65 = arith.truncf %62 : vector<16x16xf32> to vector<16x16xbf16>
    %66 = arith.truncf %64 : vector<16x32xf32> to vector<16x32xbf16>
    %cst_22 = arith.constant dense<0.000000e+00> : vector<16x32xf32>
    %67 = tpu.matmul %65, %66, %cst_22 {dimension_numbers = #tpu.dot_dimension_numbers<[1], [0], [0], [1], [0, 0, 1, 1], [], []>} : vector<16x16xbf16>, vector<16x32xbf16>, vector<16x32xf32> -> vector<16x32xf32>
    %68 = arith.addf %42, %67 : vector<16x32xf32>
    %69 = vector.extract_strided_slice %41 {offsets = [0, 8], sizes = [16, 8], strides = [1, 1]} : vector<16x96xf32> to vector<16x8xf32>
    %70 = arith.truncf %69 : vector<16x8xf32> to vector<16x8xbf16>
    %71 = vector.extract_strided_slice %41 {offsets = [0, 40], sizes = [16, 8], strides = [1, 1]} : vector<16x96xf32> to vector<16x8xf32>
    %72 = arith.truncf %71 : vector<16x8xf32> to vector<16x8xbf16>
    %73 = vector.extract_strided_slice %41 {offsets = [0, 72], sizes = [16, 8], strides = [1, 1]} : vector<16x96xf32> to vector<16x8xf32>
    %74 = arith.truncf %73 : vector<16x8xf32> to vector<16x8xbf16>
    %cst_23 = arith.constant dense<0.000000e+00> : vector<16x16xf32>
    %75 = tpu.matmul %70, %72, %cst_23 {dimension_numbers = #tpu.dot_dimension_numbers<[1], [1], [0], [0], [0, 0, 1, 0], [], []>} : vector<16x8xbf16>, vector<16x8xbf16>, vector<16x16xf32> -> vector<16x16xf32>
    %cst_24 = arith.constant 0.353553385 : f32
    %76 = vector.broadcast %cst_24 : f32 to vector<16x16xf32>
    %77 = arith.mulf %75, %76 : vector<16x16xf32>
    %78 = arith.addf %77, %22 : vector<16x16xf32>
    %cst_25 = arith.constant dense<0xFF800000> : vector<16xf32>
    %79 = vector.multi_reduction <maximumf>, %78, %cst_25 [1] : vector<16x16xf32> to vector<16xf32>
    %80 = vector.shape_cast %79 : vector<16xf32> to vector<16x1xf32>
    %81 = vector.broadcast %80 : vector<16x1xf32> to vector<16x16xf32>
    %82 = arith.subf %78, %81 : vector<16x16xf32>
    %83 = math.exp %82 : vector<16x16xf32>
    %cst_26 = arith.constant dense<0.000000e+00> : vector<16xf32>
    %84 = vector.multi_reduction <add>, %83, %cst_26 [1] : vector<16x16xf32> to vector<16xf32>
    %85 = vector.shape_cast %84 : vector<16xf32> to vector<16x1xf32>
    %86 = tpu.reciprocal %85 {approx = true} : vector<16x1xf32> -> vector<16x1xf32>
    %87 = vector.broadcast %86 : vector<16x1xf32> to vector<16x16xf32>
    %88 = arith.mulf %83, %87 : vector<16x16xf32>
    %89 = vector.extract_strided_slice %26 {offsets = [8, 0], sizes = [8, 32], strides = [1, 1]} : vector<32x32xbf16> to vector<8x32xbf16>
    %cst_27 = arith.constant dense<0.000000e+00> : vector<16x32xf32>
    %90 = tpu.matmul %74, %89, %cst_27 {dimension_numbers = #tpu.dot_dimension_numbers<[1], [0], [0], [1], [0, 0, 1, 1], [], []>} : vector<16x8xbf16>, vector<8x32xbf16>, vector<16x32xf32> -> vector<16x32xf32>
    %91 = arith.truncf %88 : vector<16x16xf32> to vector<16x16xbf16>
    %92 = arith.truncf %90 : vector<16x32xf32> to vector<16x32xbf16>
    %cst_28 = arith.constant dense<0.000000e+00> : vector<16x32xf32>
    %93 = tpu.matmul %91, %92, %cst_28 {dimension_numbers = #tpu.dot_dimension_numbers<[1], [0], [0], [1], [0, 0, 1, 1], [], []>} : vector<16x16xbf16>, vector<16x32xbf16>, vector<16x32xf32> -> vector<16x32xf32>
    %94 = arith.addf %68, %93 : vector<16x32xf32>
    %95 = vector.extract_strided_slice %41 {offsets = [0, 16], sizes = [16, 8], strides = [1, 1]} : vector<16x96xf32> to vector<16x8xf32>
    %96 = arith.truncf %95 : vector<16x8xf32> to vector<16x8xbf16>
    %97 = vector.extract_strided_slice %41 {offsets = [0, 48], sizes = [16, 8], strides = [1, 1]} : vector<16x96xf32> to vector<16x8xf32>
    %98 = arith.truncf %97 : vector<16x8xf32> to vector<16x8xbf16>
    %99 = vector.extract_strided_slice %41 {offsets = [0, 80], sizes = [16, 8], strides = [1, 1]} : vector<16x96xf32> to vector<16x8xf32>
    %100 = arith.truncf %99 : vector<16x8xf32> to vector<16x8xbf16>
    %cst_29 = arith.constant dense<0.000000e+00> : vector<16x16xf32>
    %101 = tpu.matmul %96, %98, %cst_29 {dimension_numbers = #tpu.dot_dimension_numbers<[1], [1], [0], [0], [0, 0, 1, 0], [], []>} : vector<16x8xbf16>, vector<16x8xbf16>, vector<16x16xf32> -> vector<16x16xf32>
    %cst_30 = arith.constant 0.353553385 : f32
    %102 = vector.broadcast %cst_30 : f32 to vector<16x16xf32>
    %103 = arith.mulf %101, %102 : vector<16x16xf32>
    %104 = arith.addf %103, %22 : vector<16x16xf32>
    %cst_31 = arith.constant dense<0xFF800000> : vector<16xf32>
    %105 = vector.multi_reduction <maximumf>, %104, %cst_31 [1] : vector<16x16xf32> to vector<16xf32>
    %106 = vector.shape_cast %105 : vector<16xf32> to vector<16x1xf32>
    %107 = vector.broadcast %106 : vector<16x1xf32> to vector<16x16xf32>
    %108 = arith.subf %104, %107 : vector<16x16xf32>
    %109 = math.exp %108 : vector<16x16xf32>
    %cst_32 = arith.constant dense<0.000000e+00> : vector<16xf32>
    %110 = vector.multi_reduction <add>, %109, %cst_32 [1] : vector<16x16xf32> to vector<16xf32>
    %111 = vector.shape_cast %110 : vector<16xf32> to vector<16x1xf32>
    %112 = tpu.reciprocal %111 {approx = true} : vector<16x1xf32> -> vector<16x1xf32>
    %113 = vector.broadcast %112 : vector<16x1xf32> to vector<16x16xf32>
    %114 = arith.mulf %109, %113 : vector<16x16xf32>
    %115 = vector.extract_strided_slice %26 {offsets = [16, 0], sizes = [8, 32], strides = [1, 1]} : vector<32x32xbf16> to vector<8x32xbf16>
    %cst_33 = arith.constant dense<0.000000e+00> : vector<16x32xf32>
    %116 = tpu.matmul %100, %115, %cst_33 {dimension_numbers = #tpu.dot_dimension_numbers<[1], [0], [0], [1], [0, 0, 1, 1], [], []>} : vector<16x8xbf16>, vector<8x32xbf16>, vector<16x32xf32> -> vector<16x32xf32>
    %117 = arith.truncf %114 : vector<16x16xf32> to vector<16x16xbf16>
    %118 = arith.truncf %116 : vector<16x32xf32> to vector<16x32xbf16>
    %cst_34 = arith.constant dense<0.000000e+00> : vector<16x32xf32>
    %119 = tpu.matmul %117, %118, %cst_34 {dimension_numbers = #tpu.dot_dimension_numbers<[1], [0], [0], [1], [0, 0, 1, 1], [], []>} : vector<16x16xbf16>, vector<16x32xbf16>, vector<16x32xf32> -> vector<16x32xf32>
    %120 = arith.addf %94, %119 : vector<16x32xf32>
    %121 = vector.extract_strided_slice %41 {offsets = [0, 24], sizes = [16, 8], strides = [1, 1]} : vector<16x96xf32> to vector<16x8xf32>
    %122 = arith.truncf %121 : vector<16x8xf32> to vector<16x8xbf16>
    %123 = vector.extract_strided_slice %41 {offsets = [0, 56], sizes = [16, 8], strides = [1, 1]} : vector<16x96xf32> to vector<16x8xf32>
    %124 = arith.truncf %123 : vector<16x8xf32> to vector<16x8xbf16>
    %125 = vector.extract_strided_slice %41 {offsets = [0, 88], sizes = [16, 8], strides = [1, 1]} : vector<16x96xf32> to vector<16x8xf32>
    %126 = arith.truncf %125 : vector<16x8xf32> to vector<16x8xbf16>
    %cst_35 = arith.constant dense<0.000000e+00> : vector<16x16xf32>
    %127 = tpu.matmul %122, %124, %cst_35 {dimension_numbers = #tpu.dot_dimension_numbers<[1], [1], [0], [0], [0, 0, 1, 0], [], []>} : vector<16x8xbf16>, vector<16x8xbf16>, vector<16x16xf32> -> vector<16x16xf32>
    %cst_36 = arith.constant 0.353553385 : f32
    %128 = vector.broadcast %cst_36 : f32 to vector<16x16xf32>
    %129 = arith.mulf %127, %128 : vector<16x16xf32>
    %130 = arith.addf %129, %22 : vector<16x16xf32>
    %cst_37 = arith.constant dense<0xFF800000> : vector<16xf32>
    %131 = vector.multi_reduction <maximumf>, %130, %cst_37 [1] : vector<16x16xf32> to vector<16xf32>
    %132 = vector.shape_cast %131 : vector<16xf32> to vector<16x1xf32>
    %133 = vector.broadcast %132 : vector<16x1xf32> to vector<16x16xf32>
    %134 = arith.subf %130, %133 : vector<16x16xf32>
    %135 = math.exp %134 : vector<16x16xf32>
    %cst_38 = arith.constant dense<0.000000e+00> : vector<16xf32>
    %136 = vector.multi_reduction <add>, %135, %cst_38 [1] : vector<16x16xf32> to vector<16xf32>
    %137 = vector.shape_cast %136 : vector<16xf32> to vector<16x1xf32>
    %138 = tpu.reciprocal %137 {approx = true} : vector<16x1xf32> -> vector<16x1xf32>
    %139 = vector.broadcast %138 : vector<16x1xf32> to vector<16x16xf32>
    %140 = arith.mulf %135, %139 : vector<16x16xf32>
    %141 = vector.extract_strided_slice %26 {offsets = [24, 0], sizes = [8, 32], strides = [1, 1]} : vector<32x32xbf16> to vector<8x32xbf16>
    %cst_39 = arith.constant dense<0.000000e+00> : vector<16x32xf32>
    %142 = tpu.matmul %126, %141, %cst_39 {dimension_numbers = #tpu.dot_dimension_numbers<[1], [0], [0], [1], [0, 0, 1, 1], [], []>} : vector<16x8xbf16>, vector<8x32xbf16>, vector<16x32xf32> -> vector<16x32xf32>
    %143 = arith.truncf %140 : vector<16x16xf32> to vector<16x16xbf16>
    %144 = arith.truncf %142 : vector<16x32xf32> to vector<16x32xbf16>
    %cst_40 = arith.constant dense<0.000000e+00> : vector<16x32xf32>
    %145 = tpu.matmul %143, %144, %cst_40 {dimension_numbers = #tpu.dot_dimension_numbers<[1], [0], [0], [1], [0, 0, 1, 1], [], []>} : vector<16x16xbf16>, vector<16x32xbf16>, vector<16x32xf32> -> vector<16x32xf32>
    %146 = arith.addf %120, %145 : vector<16x32xf32>
    %147 = vector.broadcast %31 : vector<1x32xf32> to vector<16x32xf32>
    %148 = arith.addf %146, %147 : vector<16x32xf32>
    %149 = arith.addf %12, %148 : vector<16x32xf32>
    %cst_41 = arith.constant dense<0.000000e+00> : vector<16xf32>
    %150 = vector.multi_reduction <add>, %149, %cst_41 [1] : vector<16x32xf32> to vector<16xf32>
    %151 = vector.shape_cast %150 : vector<16xf32> to vector<16x1xf32>
    %cst_42 = arith.constant 3.200000e+01 : f32
    %152 = vector.broadcast %cst_42 : f32 to vector<16x1xf32>
    %153 = arith.divf %151, %152 : vector<16x1xf32>
    %154 = vector.broadcast %153 : vector<16x1xf32> to vector<16x32xf32>
    %155 = arith.subf %149, %154 : vector<16x32xf32>
    %156 = arith.mulf %155, %155 : vector<16x32xf32>
    %cst_43 = arith.constant dense<0.000000e+00> : vector<16xf32>
    %157 = vector.multi_reduction <add>, %156, %cst_43 [1] : vector<16x32xf32> to vector<16xf32>
    %158 = vector.shape_cast %157 : vector<16xf32> to vector<16x1xf32>
    %cst_44 = arith.constant 3.200000e+01 : f32
    %159 = vector.broadcast %cst_44 : f32 to vector<16x1xf32>
    %160 = arith.divf %158, %159 : vector<16x1xf32>
    %161 = vector.broadcast %153 : vector<16x1xf32> to vector<16x32xf32>
    %162 = arith.subf %149, %161 : vector<16x32xf32>
    %cst_45 = arith.constant 9.99999996E-13 : f32
    %163 = vector.broadcast %cst_45 : f32 to vector<16x1xf32>
    %164 = arith.addf %160, %163 : vector<16x1xf32>
    %165 = math.rsqrt %164 : vector<16x1xf32>
    %166 = vector.broadcast %165 : vector<16x1xf32> to vector<16x32xf32>
    %167 = arith.mulf %162, %166 : vector<16x32xf32>
    %168 = vector.broadcast %34 : vector<1x32xf32> to vector<16x32xf32>
    %169 = arith.mulf %167, %168 : vector<16x32xf32>
    %170 = vector.broadcast %35 : vector<1x32xf32> to vector<16x32xf32>
    %171 = arith.addf %169, %170 : vector<16x32xf32>
    %172 = arith.truncf %171 : vector<16x32xf32> to vector<16x32xbf16>
    %cst_46 = arith.constant dense<0.000000e+00> : vector<16x64xf32>
    %173 = tpu.matmul %172, %27, %cst_46 {dimension_numbers = #tpu.dot_dimension_numbers<[1], [0], [0], [1], [0, 0, 1, 1], [], []>} : vector<16x32xbf16>, vector<32x64xbf16>, vector<16x64xf32> -> vector<16x64xf32>
    %174 = vector.broadcast %32 : vector<1x64xf32> to vector<16x64xf32>
    %175 = arith.addf %173, %174 : vector<16x64xf32>
    %176 = arith.mulf %175, %175 : vector<16x64xf32>
    %177 = arith.mulf %175, %176 : vector<16x64xf32>
    %cst_47 = arith.constant 4.471500e-02 : f32
    %178 = vector.broadcast %cst_47 : f32 to vector<16x64xf32>
    %179 = arith.mulf %178, %177 : vector<16x64xf32>
    %180 = arith.addf %175, %179 : vector<16x64xf32>
    %cst_48 = arith.constant 0.797884583 : f32
    %181 = vector.broadcast %cst_48 : f32 to vector<16x64xf32>
    %182 = arith.mulf %181, %180 : vector<16x64xf32>
    %183 = math.tanh %182 : vector<16x64xf32>
    %cst_49 = arith.constant 1.000000e+00 : f32
    %184 = vector.broadcast %cst_49 : f32 to vector<16x64xf32>
    %185 = arith.addf %184, %183 : vector<16x64xf32>
    %cst_50 = arith.constant 5.000000e-01 : f32
    %186 = vector.broadcast %cst_50 : f32 to vector<16x64xf32>
    %187 = arith.mulf %186, %185 : vector<16x64xf32>
    %188 = arith.mulf %175, %187 : vector<16x64xf32>
    %189 = arith.truncf %188 : vector<16x64xf32> to vector<16x64xbf16>
    %c0_51 = arith.constant 0 : index
    %c0_52 = arith.constant 0 : index
    %c0_53 = arith.constant 0 : index
    %190 = vector.load %arg4[%c0_51, %c0_52, %c0_53] : memref<2x64x32xbf16, #tpu.memory_space<vmem>>, vector<1x64x32xbf16>
    %191 = vector.shape_cast %190 : vector<1x64x32xbf16> to vector<64x32xbf16>
    %cst_54 = arith.constant dense<0.000000e+00> : vector<16x32xf32>
    %192 = tpu.matmul %189, %191, %cst_54 {dimension_numbers = #tpu.dot_dimension_numbers<[1], [0], [0], [1], [0, 0, 1, 1], [], []>} : vector<16x64xbf16>, vector<64x32xbf16>, vector<16x32xf32> -> vector<16x32xf32>
    %193 = vector.broadcast %33 : vector<1x32xf32> to vector<16x32xf32>
    %194 = arith.addf %192, %193 : vector<16x32xf32>
    %195 = arith.addf %171, %194 : vector<16x32xf32>
    %cst_55 = arith.constant dense<0.000000e+00> : vector<16xf32>
    %196 = vector.multi_reduction <add>, %195, %cst_55 [1] : vector<16x32xf32> to vector<16xf32>
    %197 = vector.shape_cast %196 : vector<16xf32> to vector<16x1xf32>
    %cst_56 = arith.constant 3.200000e+01 : f32
    %198 = vector.broadcast %cst_56 : f32 to vector<16x1xf32>
    %199 = arith.divf %197, %198 : vector<16x1xf32>
    %200 = vector.broadcast %199 : vector<16x1xf32> to vector<16x32xf32>
    %201 = arith.subf %195, %200 : vector<16x32xf32>
    %202 = arith.mulf %201, %201 : vector<16x32xf32>
    %cst_57 = arith.constant dense<0.000000e+00> : vector<16xf32>
    %203 = vector.multi_reduction <add>, %202, %cst_57 [1] : vector<16x32xf32> to vector<16xf32>
    %204 = vector.shape_cast %203 : vector<16xf32> to vector<16x1xf32>
    %cst_58 = arith.constant 3.200000e+01 : f32
    %205 = vector.broadcast %cst_58 : f32 to vector<16x1xf32>
    %206 = arith.divf %204, %205 : vector<16x1xf32>
    %207 = vector.broadcast %199 : vector<16x1xf32> to vector<16x32xf32>
    %208 = arith.subf %195, %207 : vector<16x32xf32>
    %cst_59 = arith.constant 9.99999996E-13 : f32
    %209 = vector.broadcast %cst_59 : f32 to vector<16x1xf32>
    %210 = arith.addf %206, %209 : vector<16x1xf32>
    %211 = math.rsqrt %210 : vector<16x1xf32>
    %212 = vector.broadcast %211 : vector<16x1xf32> to vector<16x32xf32>
    %213 = arith.mulf %208, %212 : vector<16x32xf32>
    %214 = vector.broadcast %36 : vector<1x32xf32> to vector<16x32xf32>
    %215 = arith.mulf %213, %214 : vector<16x32xf32>
    %216 = vector.broadcast %37 : vector<1x32xf32> to vector<16x32xf32>
    %217 = arith.addf %215, %216 : vector<16x32xf32>
    %c1 = arith.constant 1 : index
    %c0_60 = arith.constant 0 : index
    %c0_61 = arith.constant 0 : index
    %218 = vector.load %arg3[%c1, %c0_60, %c0_61] : memref<2x32x192xbf16, #tpu.memory_space<vmem>>, vector<1x32x192xbf16>
    %219 = vector.shape_cast %218 : vector<1x32x192xbf16> to vector<32x192xbf16>
    %220 = vector.extract_strided_slice %219 {offsets = [0, 0], sizes = [32, 96], strides = [1, 1]} : vector<32x192xbf16> to vector<32x96xbf16>
    %221 = vector.extract_strided_slice %219 {offsets = [0, 96], sizes = [32, 32], strides = [1, 1]} : vector<32x192xbf16> to vector<32x32xbf16>
    %222 = vector.extract_strided_slice %219 {offsets = [0, 128], sizes = [32, 64], strides = [1, 1]} : vector<32x192xbf16> to vector<32x64xbf16>
    %c1_62 = arith.constant 1 : index
    %c0_63 = arith.constant 0 : index
    %c0_64 = arith.constant 0 : index
    %223 = vector.load %arg5[%c1_62, %c0_63, %c0_64] : memref<2x8x128xf32, #tpu.memory_space<vmem>>, vector<1x8x128xf32>
    %224 = vector.shape_cast %223 : vector<1x8x128xf32> to vector<8x128xf32>
    %225 = vector.extract_strided_slice %224 {offsets = [0, 0], sizes = [1, 96], strides = [1, 1]} : vector<8x128xf32> to vector<1x96xf32>
    %226 = vector.extract_strided_slice %224 {offsets = [1, 0], sizes = [1, 32], strides = [1, 1]} : vector<8x128xf32> to vector<1x32xf32>
    %227 = vector.extract_strided_slice %224 {offsets = [2, 0], sizes = [1, 64], strides = [1, 1]} : vector<8x128xf32> to vector<1x64xf32>
    %228 = vector.extract_strided_slice %224 {offsets = [3, 0], sizes = [1, 32], strides = [1, 1]} : vector<8x128xf32> to vector<1x32xf32>
    %229 = vector.extract_strided_slice %224 {offsets = [4, 0], sizes = [1, 32], strides = [1, 1]} : vector<8x128xf32> to vector<1x32xf32>
    %230 = vector.extract_strided_slice %224 {offsets = [5, 0], sizes = [1, 32], strides = [1, 1]} : vector<8x128xf32> to vector<1x32xf32>
    %231 = vector.extract_strided_slice %224 {offsets = [6, 0], sizes = [1, 32], strides = [1, 1]} : vector<8x128xf32> to vector<1x32xf32>
    %232 = vector.extract_strided_slice %224 {offsets = [7, 0], sizes = [1, 32], strides = [1, 1]} : vector<8x128xf32> to vector<1x32xf32>
    %233 = arith.truncf %217 : vector<16x32xf32> to vector<16x32xbf16>
    %cst_65 = arith.constant dense<0.000000e+00> : vector<16x96xf32>
    %234 = tpu.matmul %233, %220, %cst_65 {dimension_numbers = #tpu.dot_dimension_numbers<[1], [0], [0], [1], [0, 0, 1, 1], [], []>} : vector<16x32xbf16>, vector<32x96xbf16>, vector<16x96xf32> -> vector<16x96xf32>
    %235 = vector.broadcast %225 : vector<1x96xf32> to vector<16x96xf32>
    %236 = arith.addf %234, %235 : vector<16x96xf32>
    %cst_66 = arith.constant 0.000000e+00 : f32
    %237 = vector.broadcast %cst_66 : f32 to vector<16x32xf32>
    %238 = vector.extract_strided_slice %236 {offsets = [0, 0], sizes = [16, 8], strides = [1, 1]} : vector<16x96xf32> to vector<16x8xf32>
    %239 = arith.truncf %238 : vector<16x8xf32> to vector<16x8xbf16>
    %240 = vector.extract_strided_slice %236 {offsets = [0, 32], sizes = [16, 8], strides = [1, 1]} : vector<16x96xf32> to vector<16x8xf32>
    %241 = arith.truncf %240 : vector<16x8xf32> to vector<16x8xbf16>
    %242 = vector.extract_strided_slice %236 {offsets = [0, 64], sizes = [16, 8], strides = [1, 1]} : vector<16x96xf32> to vector<16x8xf32>
    %243 = arith.truncf %242 : vector<16x8xf32> to vector<16x8xbf16>
    %cst_67 = arith.constant dense<0.000000e+00> : vector<16x16xf32>
    %244 = tpu.matmul %239, %241, %cst_67 {dimension_numbers = #tpu.dot_dimension_numbers<[1], [1], [0], [0], [0, 0, 1, 0], [], []>} : vector<16x8xbf16>, vector<16x8xbf16>, vector<16x16xf32> -> vector<16x16xf32>
    %cst_68 = arith.constant 0.353553385 : f32
    %245 = vector.broadcast %cst_68 : f32 to vector<16x16xf32>
    %246 = arith.mulf %244, %245 : vector<16x16xf32>
    %247 = arith.addf %246, %22 : vector<16x16xf32>
    %cst_69 = arith.constant dense<0xFF800000> : vector<16xf32>
    %248 = vector.multi_reduction <maximumf>, %247, %cst_69 [1] : vector<16x16xf32> to vector<16xf32>
    %249 = vector.shape_cast %248 : vector<16xf32> to vector<16x1xf32>
    %250 = vector.broadcast %249 : vector<16x1xf32> to vector<16x16xf32>
    %251 = arith.subf %247, %250 : vector<16x16xf32>
    %252 = math.exp %251 : vector<16x16xf32>
    %cst_70 = arith.constant dense<0.000000e+00> : vector<16xf32>
    %253 = vector.multi_reduction <add>, %252, %cst_70 [1] : vector<16x16xf32> to vector<16xf32>
    %254 = vector.shape_cast %253 : vector<16xf32> to vector<16x1xf32>
    %255 = tpu.reciprocal %254 {approx = true} : vector<16x1xf32> -> vector<16x1xf32>
    %256 = vector.broadcast %255 : vector<16x1xf32> to vector<16x16xf32>
    %257 = arith.mulf %252, %256 : vector<16x16xf32>
    %258 = vector.extract_strided_slice %221 {offsets = [0, 0], sizes = [8, 32], strides = [1, 1]} : vector<32x32xbf16> to vector<8x32xbf16>
    %cst_71 = arith.constant dense<0.000000e+00> : vector<16x32xf32>
    %259 = tpu.matmul %243, %258, %cst_71 {dimension_numbers = #tpu.dot_dimension_numbers<[1], [0], [0], [1], [0, 0, 1, 1], [], []>} : vector<16x8xbf16>, vector<8x32xbf16>, vector<16x32xf32> -> vector<16x32xf32>
    %260 = arith.truncf %257 : vector<16x16xf32> to vector<16x16xbf16>
    %261 = arith.truncf %259 : vector<16x32xf32> to vector<16x32xbf16>
    %cst_72 = arith.constant dense<0.000000e+00> : vector<16x32xf32>
    %262 = tpu.matmul %260, %261, %cst_72 {dimension_numbers = #tpu.dot_dimension_numbers<[1], [0], [0], [1], [0, 0, 1, 1], [], []>} : vector<16x16xbf16>, vector<16x32xbf16>, vector<16x32xf32> -> vector<16x32xf32>
    %263 = arith.addf %237, %262 : vector<16x32xf32>
    %264 = vector.extract_strided_slice %236 {offsets = [0, 8], sizes = [16, 8], strides = [1, 1]} : vector<16x96xf32> to vector<16x8xf32>
    %265 = arith.truncf %264 : vector<16x8xf32> to vector<16x8xbf16>
    %266 = vector.extract_strided_slice %236 {offsets = [0, 40], sizes = [16, 8], strides = [1, 1]} : vector<16x96xf32> to vector<16x8xf32>
    %267 = arith.truncf %266 : vector<16x8xf32> to vector<16x8xbf16>
    %268 = vector.extract_strided_slice %236 {offsets = [0, 72], sizes = [16, 8], strides = [1, 1]} : vector<16x96xf32> to vector<16x8xf32>
    %269 = arith.truncf %268 : vector<16x8xf32> to vector<16x8xbf16>
    %cst_73 = arith.constant dense<0.000000e+00> : vector<16x16xf32>
    %270 = tpu.matmul %265, %267, %cst_73 {dimension_numbers = #tpu.dot_dimension_numbers<[1], [1], [0], [0], [0, 0, 1, 0], [], []>} : vector<16x8xbf16>, vector<16x8xbf16>, vector<16x16xf32> -> vector<16x16xf32>
    %cst_74 = arith.constant 0.353553385 : f32
    %271 = vector.broadcast %cst_74 : f32 to vector<16x16xf32>
    %272 = arith.mulf %270, %271 : vector<16x16xf32>
    %273 = arith.addf %272, %22 : vector<16x16xf32>
    %cst_75 = arith.constant dense<0xFF800000> : vector<16xf32>
    %274 = vector.multi_reduction <maximumf>, %273, %cst_75 [1] : vector<16x16xf32> to vector<16xf32>
    %275 = vector.shape_cast %274 : vector<16xf32> to vector<16x1xf32>
    %276 = vector.broadcast %275 : vector<16x1xf32> to vector<16x16xf32>
    %277 = arith.subf %273, %276 : vector<16x16xf32>
    %278 = math.exp %277 : vector<16x16xf32>
    %cst_76 = arith.constant dense<0.000000e+00> : vector<16xf32>
    %279 = vector.multi_reduction <add>, %278, %cst_76 [1] : vector<16x16xf32> to vector<16xf32>
    %280 = vector.shape_cast %279 : vector<16xf32> to vector<16x1xf32>
    %281 = tpu.reciprocal %280 {approx = true} : vector<16x1xf32> -> vector<16x1xf32>
    %282 = vector.broadcast %281 : vector<16x1xf32> to vector<16x16xf32>
    %283 = arith.mulf %278, %282 : vector<16x16xf32>
    %284 = vector.extract_strided_slice %221 {offsets = [8, 0], sizes = [8, 32], strides = [1, 1]} : vector<32x32xbf16> to vector<8x32xbf16>
    %cst_77 = arith.constant dense<0.000000e+00> : vector<16x32xf32>
    %285 = tpu.matmul %269, %284, %cst_77 {dimension_numbers = #tpu.dot_dimension_numbers<[1], [0], [0], [1], [0, 0, 1, 1], [], []>} : vector<16x8xbf16>, vector<8x32xbf16>, vector<16x32xf32> -> vector<16x32xf32>
    %286 = arith.truncf %283 : vector<16x16xf32> to vector<16x16xbf16>
    %287 = arith.truncf %285 : vector<16x32xf32> to vector<16x32xbf16>
    %cst_78 = arith.constant dense<0.000000e+00> : vector<16x32xf32>
    %288 = tpu.matmul %286, %287, %cst_78 {dimension_numbers = #tpu.dot_dimension_numbers<[1], [0], [0], [1], [0, 0, 1, 1], [], []>} : vector<16x16xbf16>, vector<16x32xbf16>, vector<16x32xf32> -> vector<16x32xf32>
    %289 = arith.addf %263, %288 : vector<16x32xf32>
    %290 = vector.extract_strided_slice %236 {offsets = [0, 16], sizes = [16, 8], strides = [1, 1]} : vector<16x96xf32> to vector<16x8xf32>
    %291 = arith.truncf %290 : vector<16x8xf32> to vector<16x8xbf16>
    %292 = vector.extract_strided_slice %236 {offsets = [0, 48], sizes = [16, 8], strides = [1, 1]} : vector<16x96xf32> to vector<16x8xf32>
    %293 = arith.truncf %292 : vector<16x8xf32> to vector<16x8xbf16>
    %294 = vector.extract_strided_slice %236 {offsets = [0, 80], sizes = [16, 8], strides = [1, 1]} : vector<16x96xf32> to vector<16x8xf32>
    %295 = arith.truncf %294 : vector<16x8xf32> to vector<16x8xbf16>
    %cst_79 = arith.constant dense<0.000000e+00> : vector<16x16xf32>
    %296 = tpu.matmul %291, %293, %cst_79 {dimension_numbers = #tpu.dot_dimension_numbers<[1], [1], [0], [0], [0, 0, 1, 0], [], []>} : vector<16x8xbf16>, vector<16x8xbf16>, vector<16x16xf32> -> vector<16x16xf32>
    %cst_80 = arith.constant 0.353553385 : f32
    %297 = vector.broadcast %cst_80 : f32 to vector<16x16xf32>
    %298 = arith.mulf %296, %297 : vector<16x16xf32>
    %299 = arith.addf %298, %22 : vector<16x16xf32>
    %cst_81 = arith.constant dense<0xFF800000> : vector<16xf32>
    %300 = vector.multi_reduction <maximumf>, %299, %cst_81 [1] : vector<16x16xf32> to vector<16xf32>
    %301 = vector.shape_cast %300 : vector<16xf32> to vector<16x1xf32>
    %302 = vector.broadcast %301 : vector<16x1xf32> to vector<16x16xf32>
    %303 = arith.subf %299, %302 : vector<16x16xf32>
    %304 = math.exp %303 : vector<16x16xf32>
    %cst_82 = arith.constant dense<0.000000e+00> : vector<16xf32>
    %305 = vector.multi_reduction <add>, %304, %cst_82 [1] : vector<16x16xf32> to vector<16xf32>
    %306 = vector.shape_cast %305 : vector<16xf32> to vector<16x1xf32>
    %307 = tpu.reciprocal %306 {approx = true} : vector<16x1xf32> -> vector<16x1xf32>
    %308 = vector.broadcast %307 : vector<16x1xf32> to vector<16x16xf32>
    %309 = arith.mulf %304, %308 : vector<16x16xf32>
    %310 = vector.extract_strided_slice %221 {offsets = [16, 0], sizes = [8, 32], strides = [1, 1]} : vector<32x32xbf16> to vector<8x32xbf16>
    %cst_83 = arith.constant dense<0.000000e+00> : vector<16x32xf32>
    %311 = tpu.matmul %295, %310, %cst_83 {dimension_numbers = #tpu.dot_dimension_numbers<[1], [0], [0], [1], [0, 0, 1, 1], [], []>} : vector<16x8xbf16>, vector<8x32xbf16>, vector<16x32xf32> -> vector<16x32xf32>
    %312 = arith.truncf %309 : vector<16x16xf32> to vector<16x16xbf16>
    %313 = arith.truncf %311 : vector<16x32xf32> to vector<16x32xbf16>
    %cst_84 = arith.constant dense<0.000000e+00> : vector<16x32xf32>
    %314 = tpu.matmul %312, %313, %cst_84 {dimension_numbers = #tpu.dot_dimension_numbers<[1], [0], [0], [1], [0, 0, 1, 1], [], []>} : vector<16x16xbf16>, vector<16x32xbf16>, vector<16x32xf32> -> vector<16x32xf32>
    %315 = arith.addf %289, %314 : vector<16x32xf32>
    %316 = vector.extract_strided_slice %236 {offsets = [0, 24], sizes = [16, 8], strides = [1, 1]} : vector<16x96xf32> to vector<16x8xf32>
    %317 = arith.truncf %316 : vector<16x8xf32> to vector<16x8xbf16>
    %318 = vector.extract_strided_slice %236 {offsets = [0, 56], sizes = [16, 8], strides = [1, 1]} : vector<16x96xf32> to vector<16x8xf32>
    %319 = arith.truncf %318 : vector<16x8xf32> to vector<16x8xbf16>
    %320 = vector.extract_strided_slice %236 {offsets = [0, 88], sizes = [16, 8], strides = [1, 1]} : vector<16x96xf32> to vector<16x8xf32>
    %321 = arith.truncf %320 : vector<16x8xf32> to vector<16x8xbf16>
    %cst_85 = arith.constant dense<0.000000e+00> : vector<16x16xf32>
    %322 = tpu.matmul %317, %319, %cst_85 {dimension_numbers = #tpu.dot_dimension_numbers<[1], [1], [0], [0], [0, 0, 1, 0], [], []>} : vector<16x8xbf16>, vector<16x8xbf16>, vector<16x16xf32> -> vector<16x16xf32>
    %cst_86 = arith.constant 0.353553385 : f32
    %323 = vector.broadcast %cst_86 : f32 to vector<16x16xf32>
    %324 = arith.mulf %322, %323 : vector<16x16xf32>
    %325 = arith.addf %324, %22 : vector<16x16xf32>
    %cst_87 = arith.constant dense<0xFF800000> : vector<16xf32>
    %326 = vector.multi_reduction <maximumf>, %325, %cst_87 [1] : vector<16x16xf32> to vector<16xf32>
    %327 = vector.shape_cast %326 : vector<16xf32> to vector<16x1xf32>
    %328 = vector.broadcast %327 : vector<16x1xf32> to vector<16x16xf32>
    %329 = arith.subf %325, %328 : vector<16x16xf32>
    %330 = math.exp %329 : vector<16x16xf32>
    %cst_88 = arith.constant dense<0.000000e+00> : vector<16xf32>
    %331 = vector.multi_reduction <add>, %330, %cst_88 [1] : vector<16x16xf32> to vector<16xf32>
    %332 = vector.shape_cast %331 : vector<16xf32> to vector<16x1xf32>
    %333 = tpu.reciprocal %332 {approx = true} : vector<16x1xf32> -> vector<16x1xf32>
    %334 = vector.broadcast %333 : vector<16x1xf32> to vector<16x16xf32>
    %335 = arith.mulf %330, %334 : vector<16x16xf32>
    %336 = vector.extract_strided_slice %221 {offsets = [24, 0], sizes = [8, 32], strides = [1, 1]} : vector<32x32xbf16> to vector<8x32xbf16>
    %cst_89 = arith.constant dense<0.000000e+00> : vector<16x32xf32>
    %337 = tpu.matmul %321, %336, %cst_89 {dimension_numbers = #tpu.dot_dimension_numbers<[1], [0], [0], [1], [0, 0, 1, 1], [], []>} : vector<16x8xbf16>, vector<8x32xbf16>, vector<16x32xf32> -> vector<16x32xf32>
    %338 = arith.truncf %335 : vector<16x16xf32> to vector<16x16xbf16>
    %339 = arith.truncf %337 : vector<16x32xf32> to vector<16x32xbf16>
    %cst_90 = arith.constant dense<0.000000e+00> : vector<16x32xf32>
    %340 = tpu.matmul %338, %339, %cst_90 {dimension_numbers = #tpu.dot_dimension_numbers<[1], [0], [0], [1], [0, 0, 1, 1], [], []>} : vector<16x16xbf16>, vector<16x32xbf16>, vector<16x32xf32> -> vector<16x32xf32>
    %341 = arith.addf %315, %340 : vector<16x32xf32>
    %342 = vector.broadcast %226 : vector<1x32xf32> to vector<16x32xf32>
    %343 = arith.addf %341, %342 : vector<16x32xf32>
    %344 = arith.addf %217, %343 : vector<16x32xf32>
    %cst_91 = arith.constant dense<0.000000e+00> : vector<16xf32>
    %345 = vector.multi_reduction <add>, %344, %cst_91 [1] : vector<16x32xf32> to vector<16xf32>
    %346 = vector.shape_cast %345 : vector<16xf32> to vector<16x1xf32>
    %cst_92 = arith.constant 3.200000e+01 : f32
    %347 = vector.broadcast %cst_92 : f32 to vector<16x1xf32>
    %348 = arith.divf %346, %347 : vector<16x1xf32>
    %349 = vector.broadcast %348 : vector<16x1xf32> to vector<16x32xf32>
    %350 = arith.subf %344, %349 : vector<16x32xf32>
    %351 = arith.mulf %350, %350 : vector<16x32xf32>
    %cst_93 = arith.constant dense<0.000000e+00> : vector<16xf32>
    %352 = vector.multi_reduction <add>, %351, %cst_93 [1] : vector<16x32xf32> to vector<16xf32>
    %353 = vector.shape_cast %352 : vector<16xf32> to vector<16x1xf32>
    %cst_94 = arith.constant 3.200000e+01 : f32
    %354 = vector.broadcast %cst_94 : f32 to vector<16x1xf32>
    %355 = arith.divf %353, %354 : vector<16x1xf32>
    %356 = vector.broadcast %348 : vector<16x1xf32> to vector<16x32xf32>
    %357 = arith.subf %344, %356 : vector<16x32xf32>
    %cst_95 = arith.constant 9.99999996E-13 : f32
    %358 = vector.broadcast %cst_95 : f32 to vector<16x1xf32>
    %359 = arith.addf %355, %358 : vector<16x1xf32>
    %360 = math.rsqrt %359 : vector<16x1xf32>
    %361 = vector.broadcast %360 : vector<16x1xf32> to vector<16x32xf32>
    %362 = arith.mulf %357, %361 : vector<16x32xf32>
    %363 = vector.broadcast %229 : vector<1x32xf32> to vector<16x32xf32>
    %364 = arith.mulf %362, %363 : vector<16x32xf32>
    %365 = vector.broadcast %230 : vector<1x32xf32> to vector<16x32xf32>
    %366 = arith.addf %364, %365 : vector<16x32xf32>
    %367 = arith.truncf %366 : vector<16x32xf32> to vector<16x32xbf16>
    %cst_96 = arith.constant dense<0.000000e+00> : vector<16x64xf32>
    %368 = tpu.matmul %367, %222, %cst_96 {dimension_numbers = #tpu.dot_dimension_numbers<[1], [0], [0], [1], [0, 0, 1, 1], [], []>} : vector<16x32xbf16>, vector<32x64xbf16>, vector<16x64xf32> -> vector<16x64xf32>
    %369 = vector.broadcast %227 : vector<1x64xf32> to vector<16x64xf32>
    %370 = arith.addf %368, %369 : vector<16x64xf32>
    %371 = arith.mulf %370, %370 : vector<16x64xf32>
    %372 = arith.mulf %370, %371 : vector<16x64xf32>
    %cst_97 = arith.constant 4.471500e-02 : f32
    %373 = vector.broadcast %cst_97 : f32 to vector<16x64xf32>
    %374 = arith.mulf %373, %372 : vector<16x64xf32>
    %375 = arith.addf %370, %374 : vector<16x64xf32>
    %cst_98 = arith.constant 0.797884583 : f32
    %376 = vector.broadcast %cst_98 : f32 to vector<16x64xf32>
    %377 = arith.mulf %376, %375 : vector<16x64xf32>
    %378 = math.tanh %377 : vector<16x64xf32>
    %cst_99 = arith.constant 1.000000e+00 : f32
    %379 = vector.broadcast %cst_99 : f32 to vector<16x64xf32>
    %380 = arith.addf %379, %378 : vector<16x64xf32>
    %cst_100 = arith.constant 5.000000e-01 : f32
    %381 = vector.broadcast %cst_100 : f32 to vector<16x64xf32>
    %382 = arith.mulf %381, %380 : vector<16x64xf32>
    %383 = arith.mulf %370, %382 : vector<16x64xf32>
    %384 = arith.truncf %383 : vector<16x64xf32> to vector<16x64xbf16>
    %c1_101 = arith.constant 1 : index
    %c0_102 = arith.constant 0 : index
    %c0_103 = arith.constant 0 : index
    %385 = vector.load %arg4[%c1_101, %c0_102, %c0_103] : memref<2x64x32xbf16, #tpu.memory_space<vmem>>, vector<1x64x32xbf16>
    %386 = vector.shape_cast %385 : vector<1x64x32xbf16> to vector<64x32xbf16>
    %cst_104 = arith.constant dense<0.000000e+00> : vector<16x32xf32>
    %387 = tpu.matmul %384, %386, %cst_104 {dimension_numbers = #tpu.dot_dimension_numbers<[1], [0], [0], [1], [0, 0, 1, 1], [], []>} : vector<16x64xbf16>, vector<64x32xbf16>, vector<16x32xf32> -> vector<16x32xf32>
    %388 = vector.broadcast %228 : vector<1x32xf32> to vector<16x32xf32>
    %389 = arith.addf %387, %388 : vector<16x32xf32>
    %390 = arith.addf %366, %389 : vector<16x32xf32>
    %cst_105 = arith.constant dense<0.000000e+00> : vector<16xf32>
    %391 = vector.multi_reduction <add>, %390, %cst_105 [1] : vector<16x32xf32> to vector<16xf32>
    %392 = vector.shape_cast %391 : vector<16xf32> to vector<16x1xf32>
    %cst_106 = arith.constant 3.200000e+01 : f32
    %393 = vector.broadcast %cst_106 : f32 to vector<16x1xf32>
    %394 = arith.divf %392, %393 : vector<16x1xf32>
    %395 = vector.broadcast %394 : vector<16x1xf32> to vector<16x32xf32>
    %396 = arith.subf %390, %395 : vector<16x32xf32>
    %397 = arith.mulf %396, %396 : vector<16x32xf32>
    %cst_107 = arith.constant dense<0.000000e+00> : vector<16xf32>
    %398 = vector.multi_reduction <add>, %397, %cst_107 [1] : vector<16x32xf32> to vector<16xf32>
    %399 = vector.shape_cast %398 : vector<16xf32> to vector<16x1xf32>
    %cst_108 = arith.constant 3.200000e+01 : f32
    %400 = vector.broadcast %cst_108 : f32 to vector<16x1xf32>
    %401 = arith.divf %399, %400 : vector<16x1xf32>
    %402 = vector.broadcast %394 : vector<16x1xf32> to vector<16x32xf32>
    %403 = arith.subf %390, %402 : vector<16x32xf32>
    %cst_109 = arith.constant 9.99999996E-13 : f32
    %404 = vector.broadcast %cst_109 : f32 to vector<16x1xf32>
    %405 = arith.addf %401, %404 : vector<16x1xf32>
    %406 = math.rsqrt %405 : vector<16x1xf32>
    %407 = vector.broadcast %406 : vector<16x1xf32> to vector<16x32xf32>
    %408 = arith.mulf %403, %407 : vector<16x32xf32>
    %409 = vector.broadcast %231 : vector<1x32xf32> to vector<16x32xf32>
    %410 = arith.mulf %408, %409 : vector<16x32xf32>
    %411 = vector.broadcast %232 : vector<1x32xf32> to vector<16x32xf32>
    %412 = arith.addf %410, %411 : vector<16x32xf32>
    %c0_110 = arith.constant 0 : index
    %c0_111 = arith.constant 0 : index
    %413 = vector.load %arg6[%c0_110, %c0_111] : memref<40x128xbf16, #tpu.memory_space<vmem>>, vector<32x128xbf16>
    %c32 = arith.constant 32 : index
    %c0_112 = arith.constant 0 : index
    %414 = vector.load %arg6[%c32, %c0_112] : memref<40x128xbf16, #tpu.memory_space<vmem>>, vector<1x128xbf16>
    %415 = arith.extf %414 : vector<1x128xbf16> to vector<1x128xf32>
    %416 = math.tanh %412 : vector<16x32xf32>
    %417 = arith.truncf %416 : vector<16x32xf32> to vector<16x32xbf16>
    %cst_113 = arith.constant dense<0.000000e+00> : vector<16x128xf32>
    %418 = tpu.matmul %417, %413, %cst_113 {dimension_numbers = #tpu.dot_dimension_numbers<[1], [0], [0], [1], [0, 0, 1, 1], [], []>} : vector<16x32xbf16>, vector<32x128xbf16>, vector<16x128xf32> -> vector<16x128xf32>
    %419 = tpu.iota {dimensions = array<i32: 0>} : vector<8x16xi32>
    %420 = tpu.iota {dimensions = array<i32: 1>} : vector<8x16xi32>
    %c8_i32 = arith.constant 8 : i32
    %421 = vector.broadcast %c8_i32 : i32 to vector<8x16xi32>
    %422 = arith.muli %419, %421 : vector<8x16xi32>
    %423 = arith.cmpi eq, %420, %422 : vector<8x16xi32>
    %cst_114 = arith.constant 1.000000e+00 : f32
    %cst_115 = arith.constant 0.000000e+00 : f32
    %424 = vector.broadcast %cst_114 : f32 to vector<8x16xf32>
    %425 = vector.broadcast %cst_115 : f32 to vector<8x16xf32>
    %426 = arith.select %423, %424, %425 : vector<8x16xi1>, vector<8x16xf32>
    %cst_116 = arith.constant dense<0.000000e+00> : vector<8x128xf32>
    %427 = tpu.matmul %426, %418, %cst_116 {dimension_numbers = #tpu.dot_dimension_numbers<[1], [0], [0], [1], [0, 0, 1, 1], [], []>} : vector<8x16xf32>, vector<16x128xf32>, vector<8x128xf32> -> vector<8x128xf32>
    %428 = vector.broadcast %415 : vector<1x128xf32> to vector<8x128xf32>
    %429 = arith.addf %427, %428 : vector<8x128xf32>
    %c0_117 = arith.constant 0 : index
    %c0_118 = arith.constant 0 : index
    %430 = vector.load %arg7[%c0_117, %c0_118] : memref<8x128xf32, #tpu.memory_space<vmem>>, vector<8x128xf32>
    tpu.vector_store %arg7[%c0_117, %c0_118], %429 {strides = array<i32>} : memref<8x128xf32, #tpu.memory_space<vmem>>, vector<8x128xf32>,
    return
  }
  func.func @transform_0(%arg0: i32) -> (i32, i32) {
    %c0_i32 = arith.constant 0 : i32
    %c0_i32_0 = arith.constant 0 : i32
    %c0_i32_1 = arith.constant 0 : i32
    return %c0_i32, %c0_i32_0 : i32, i32
  }
  func.func @transform_1(%arg0: i32) -> (i32, i32) {
    %c0_i32 = arith.constant 0 : i32
    %c0_i32_0 = arith.constant 0 : i32
    %c0_i32_1 = arith.constant 0 : i32
    return %c0_i32, %c0_i32_0 : i32, i32
  }
  func.func @transform_2(%arg0: i32) -> (i32, i32, i32) {
    %c0_i32 = arith.constant 0 : i32
    %c0_i32_0 = arith.constant 0 : i32
    %c0_i32_1 = arith.constant 0 : i32
    %c0_i32_2 = arith.constant 0 : i32
    return %c0_i32, %c0_i32_0, %c0_i32_1 : i32, i32, i32
  }
  func.func @transform_3(%arg0: i32) -> (i32, i32, i32) {
    %c0_i32 = arith.constant 0 : i32
    %c0_i32_0 = arith.constant 0 : i32
    %c0_i32_1 = arith.constant 0 : i32
    %c0_i32_2 = arith.constant 0 : i32
    return %c0_i32, %c0_i32_0, %c0_i32_1 : i32, i32, i32
  }
  func.func @transform_4(%arg0: i32) -> (i32, i32, i32) {
    %c0_i32 = arith.constant 0 : i32
    %c0_i32_0 = arith.constant 0 : i32
    %c0_i32_1 = arith.constant 0 : i32
    %c0_i32_2 = arith.constant 0 : i32
    return %c0_i32, %c0_i32_0, %c0_i32_1 : i32, i32, i32
  }
  func.func @transform_5(%arg0: i32) -> (i32, i32) {
    %c0_i32 = arith.constant 0 : i32
    %c0_i32_0 = arith.constant 0 : i32
    %c0_i32_1 = arith.constant 0 : i32
    return %c0_i32, %c0_i32_0 : i32, i32
  }
  func.func @transform_6(%arg0: i32) -> (i32, i32) {
    %c0_i32 = arith.constant 0 : i32
    %c0_i32_0 = arith.constant 0 : i32
    %c0_i32_1 = arith.constant 0 : i32
    return %c0_i32, %c0_i32_0 : i32, i32
  }
}

</mosaic_0001>

<llo_original>
// kernel: tpu_custom_call.1
$region0: #{tpu_custom_call.1}
  #allocation0 [shape = 'u32[]', space=smem, size = 0x4, offset = 0x4, fixed_abs, tag = 'smem constant byte address 0x4 - core index']
  #allocation1 [shape = 'u32[72,128]{1,0:T(1,128)}', space=vmem, size = 0x9000, scoped, tag = 'internal scratch']
  %s0 = inlined_call_operand.vmem [shape: s32[16,1], index: 0, kind: input, shape index: {}]
  %s1 = inlined_call_operand.vmem [shape: bf16[144,32], index: 1, kind: input, shape index: {}]
  %s2 = inlined_call_operand.vmem [shape: bf16[2,32,192], index: 2, kind: input, shape index: {}]
  %s3 = inlined_call_operand.vmem [shape: bf16[2,64,32], index: 3, kind: input, shape index: {}]
  %s4 = inlined_call_operand.vmem [shape: f32[2,8,128], index: 4, kind: input, shape index: {}]
  %s5 = inlined_call_operand.vmem [shape: bf16[40,128], index: 5, kind: input, shape index: {}]
  %s6 = inlined_call_operand.hbm [shape: f32[8,128], index: 6, kind: output, shape index: {}]
  %s7 = sld [smem:[#allocation0]]
  $region34: #{tpu_custom_call.1} parent=0
    _
  %s9 = ssub.s32 1, %s7
  %s10 = scalar_select 0, %s9, %s7
  $region1: #{tpu_custom_call.1} parent=0
    #allocation2 [shape = 'u8[4096]{0}', space=vmem, size = 0x1000, scoped, tag = 'output window, operand 0, single buffered']
    #allocation3 [shape = 's32[1]{0}', space=sflag, size = 0x4, scoped, tag = 'scoped memory for tpu_custom_call.1']
    %11 = vsyncpa [#allocation3], 0
    // Predicated region
    $region2: #{tpu_custom_call.1} parent=1 // pred_check
      _
    $region3: #{tpu_custom_call.1} parent=1 // pred_check_branch
      %13 = sbr.rel (0) target = $region5
    $region4: #{tpu_custom_call.1} parent=1 // pred_region
      _
    $region5: #{tpu_custom_call.1} parent=1 // pred_fallthru
      _
    // Predicated region
    $region6: #{tpu_custom_call.1} parent=1 // pred_check
      _
    $region7: #{tpu_custom_call.1} parent=1 // pred_check_branch
      %15 = sbr.rel (0) target = $region9
    $region8: #{tpu_custom_call.1} parent=1 // pred_region
      _
    $region9: #{tpu_custom_call.1} parent=1 // pred_fallthru
      _
    // Predicated region
    $region10: #{tpu_custom_call.1} parent=1 // pred_check
      _
    $region11: #{tpu_custom_call.1} parent=1 // pred_check_branch
      %17 = sbr.rel (0) target = $region13
    $region12: #{tpu_custom_call.1} parent=1 // pred_region
      _
    $region13: #{tpu_custom_call.1} parent=1 // pred_fallthru
      _
    // Predicated region
    $region14: #{tpu_custom_call.1} parent=1 // pred_check
      _
    $region15: #{tpu_custom_call.1} parent=1 // pred_check_branch
      %19 = sbr.rel (0) target = $region17
    $region16: #{tpu_custom_call.1} parent=1 // pred_region
      _
    $region17: #{tpu_custom_call.1} parent=1 // pred_fallthru
      _
    // Predicated region
    $region18: #{tpu_custom_call.1} parent=1 // pred_check
      _
    $region19: #{tpu_custom_call.1} parent=1 // pred_check_branch
      %21 = sbr.rel (0) target = $region21
    $region20: #{tpu_custom_call.1} parent=1 // pred_region
      _
    $region21: #{tpu_custom_call.1} parent=1 // pred_fallthru
      _
    // Predicated region
    $region22: #{tpu_custom_call.1} parent=1 // pred_check
      _
    $region23: #{tpu_custom_call.1} parent=1 // pred_check_branch
      %23 = sbr.rel (0) target = $region25
    $region24: #{tpu_custom_call.1} parent=1 // pred_region
      _
    $region25: #{tpu_custom_call.1} parent=1 // pred_fallthru
      _
    %v25 = vld [vmem:[%s0] sm:$0xff]
    %v26 = vld [vmem:[%s0 + $0x8] sm:$0xff]
    %v27 = vlaneseq
    %v28 = vand.u32 %v27, 127
    %29 = vset.pattern.permute.xlu0 0
    %30 = vperm.xlu0 %29, %v25
    %v31 = vpop.permute.xlu0 %30
    %32 = vset.pattern.permute.xlu0 0
    %33 = vperm.xlu0 %32, %v26
    %v34 = vpop.permute.xlu0 %33
    %vm35 = vcmp.eq.s32.totalorder %v28, %v31
    %vm36 = vcmp.eq.s32.totalorder %v28, %v34
    %v37 = vsel %vm35, 1.0, 0.0
    %v38 = vsel %vm36, 1.0, 0.0
    %v39 = vpack.c.bf16 %v38, %v37
    %v40 = vld [vmem:[%s1] sm:$0xf]
    %v41 = vld [vmem:[%s1 + $0x4] sm:$0xf]
    %v42 = vld [vmem:[%s1 + $0x8] sm:$0xf]
    %v43 = vld [vmem:[%s1 + $0xc] sm:$0xf]
    %v44 = vld [vmem:[%s1 + $0x10] sm:$0xf]
    %v45 = vld [vmem:[%s1 + $0x14] sm:$0xf]
    %v46 = vld [vmem:[%s1 + $0x18] sm:$0xf]
    %v47 = vld [vmem:[%s1 + $0x1c] sm:$0xf]
    %v48 = vld [vmem:[%s1 + $0x20] sm:$0xf]
    %v49 = vld [vmem:[%s1 + $0x24] sm:$0xf]
    %v50 = vld [vmem:[%s1 + $0x28] sm:$0xf]
    %v51 = vld [vmem:[%s1 + $0x2c] sm:$0xf]
    %v52 = vld [vmem:[%s1 + $0x30] sm:$0xf]
    %v53 = vld [vmem:[%s1 + $0x34] sm:$0xf]
    %v54 = vld [vmem:[%s1 + $0x38] sm:$0xf]
    %v55 = vld [vmem:[%s1 + $0x3c] sm:$0xf]
    %v56 = vld [vmem:[%s1 + $0x40] sm:$0xf]
    %v57 = vld [vmem:[%s1 + $0x44] sm:$0xf]
    %v58 = vunpack.c.l.bf16 %v56
    %v59 = vunpack.c.l.bf16 %v57
    %v76 = vunpack.c.l.b16 %v40
    %v77 = vunpack.c.l.b16 %v41
    %v78 = vunpack.c.l.b16 %v42
    %v79 = vunpack.c.l.b16 %v43
    %v80 = vunpack.c.l.b16 %v44
    %v81 = vunpack.c.l.b16 %v45
    %v82 = vunpack.c.l.b16 %v46
    %v83 = vunpack.c.l.b16 %v47
    %v84 = vunpack.c.l.b16 %v48
    %v85 = vunpack.c.l.b16 %v49
    %v86 = vunpack.c.l.b16 %v50
    %v87 = vunpack.c.l.b16 %v51
    %v88 = vunpack.c.l.b16 %v52
    %v89 = vunpack.c.l.b16 %v53
    %v90 = vunpack.c.l.b16 %v54
    %v91 = vunpack.c.l.b16 %v55
    %v92 = vpack.c.b16 %v77, %v76
    %v93 = vpack.c.b16 %v79, %v78
    %v94 = vpack.c.b16 %v81, %v80
    %v95 = vpack.c.b16 %v83, %v82
    %v96 = vpack.c.b16 %v85, %v84
    %v97 = vpack.c.b16 %v87, %v86
    %v98 = vpack.c.b16 %v89, %v88
    %v99 = vpack.c.b16 %v91, %v90
    %108 = vmatpush.bf16.msra.mxu0 %v99
    %109 = vmatpush.bf16.msra.mxu0 %v98
    %110 = vmatpush.bf16.msra.mxu0 %v97
    %111 = vmatpush.bf16.msra.mxu0 %v96
    %112 = vmatpush.bf16.msra.mxu0 %v95
    %113 = vmatpush.bf16.msra.mxu0 %v94
    %114 = vmatpush.bf16.msra.mxu0 %v93
    %115 = vmatpush.bf16.msra.mxu0 %v92
    %116 = vmatmul.bf16.gmra.mxu0 %v39
    %v117 = vpop.f32.mrf.mxu0
    %v118 = vadd.f32 %v58, %v117
    %v119 = vpop.f32.mrf.mxu0
    %v120 = vadd.f32 %v59, %v119
    %121 = vdwg.mxu0
    %v122 = vlaneseq
    %v123 = vshrl.u32 %v122, 7
    %v124 = vadd.s32 %v123, 8
    %v125 = vshrl.u32 %v123, 3
    %v126 = vshrl.u32 %v124, 3
    %v127 = vshrl.u32 %v28, 3
    %vm128 = vcmp.eq.s32.totalorder %v125, %v127
    %vm129 = vcmp.eq.s32.totalorder %v126, %v127
    %v130 = vsel %vm128, 0.0, -1e+09
    %v131 = vsel %vm129, 0.0, -1e+09
    %v132 = vld [vmem:[%s2] sm:$0xff]
    %v133 = vld [vmem:[%s2 + $0x8] sm:$0xff]
    %v134 = vld [vmem:[%s2 + $0x10] sm:$0xff]
    %v135 = vld [vmem:[%s2 + $0x18] sm:$0xff]
    %v136 = vld [vmem:[%s4] sm:$0xff]
    %v137 = vpack.c.bf16 %v120, %v118
    %v138 = vperm.slane %v136, 0
    %v143 = vunpack.c.l.b16 %v132
    %v144 = vunpack.c.l.b16 %v133
    %v145 = vunpack.c.l.b16 %v134
    %v146 = vunpack.c.l.b16 %v135
    %v147 = vpack.c.b16 %v144, %v143
    %v148 = vpack.c.b16 %v146, %v145
    %vm151 = vcmask 261120
    %v153 = vsel %vm151, %v137, 0
    %155 = vmatpush.bf16.msra.mxu0 0
    %156 = vmatpush.bf16.msra.mxu0 0
    %157 = vmatpush.bf16.msra.mxu0 0
    %158 = vmatpush.bf16.msra.mxu0 0
    %159 = vmatpush.bf16.msra.mxu0 0
    %160 = vmatpush.bf16.msra.mxu0 0
    %161 = vmatpush.bf16.msra.mxu0 %v148
    %162 = vmatpush.bf16.msra.mxu0 %v147
    %163 = vmatmul.bf16.gmra.mxu0 %v153
    %v164 = vpop.f32.mrf.mxu0
    %v165 = vadd.f32 %v138, %v164
    %v166 = vpop.f32.mrf.mxu0
    %v167 = vadd.f32 %v138, %v166
    %168 = vdwg.mxu0
    %v169 = vpack.c.bf16 %v167, %v165
    %171 = vrot.lane.b32.xlu0 %v169, 96
    %v172 = vpop.permute.xlu0 %171
    %vm173 = vcmask 64512
    %v175 = vsel %vm173, %v169, 0
    %v178 = vsel %vm173, %v172, 0
    %180 = vmatpush.bf16.xpose.msra.mxu0 0
    %181 = vmatpush.bf16.xpose.msra.mxu0 0
    %182 = vmatpush.bf16.xpose.msra.mxu0 0
    %183 = vmatpush.bf16.xpose.msra.mxu0 0
    %184 = vmatpush.bf16.xpose.msra.mxu0 0
    %185 = vmatpush.bf16.xpose.msra.mxu0 0
    %186 = vmatpush.bf16.xpose.msra.mxu0 0
    %187 = vmatpush.bf16.xpose.msra.mxu0 %v178
    %188 = vmatmul.bf16.gmra.mxu0 %v175
    %v189 = vpop.f32.mrf.mxu0
    %v190 = vadd.f32 0.0, %v189
    %v191 = vpop.f32.mrf.mxu0
    %v192 = vadd.f32 0.0, %v191
    %193 = vdwg.mxu0
    %v194 = vmul.f32 %v190, 0.35355338
    %v195 = vmul.f32 %v192, 0.35355338
    %v196 = vadd.f32 %v194, %v130
    %v197 = vadd.f32 %v195, %v131
    %vm198 = vcmask 130048
    %v199 = vsel %vm198, %v196, -inf
    %200 = vmax.xlane.f32.xlu0 %v199
    %v201 = vpop.xlane.xlu0 %200
    %v202 = vsel %vm198, %v197, -inf
    %203 = vmax.xlane.f32.xlu0 %v202
    %v204 = vpop.xlane.xlu0 %203
    %v205 = vsub.f32 %v196, %v201
    %v206 = vsub.f32 %v197, %v204
    %v207 = vmul.f32 %v205, 1.442695
    %v208 = vpow.pop %v207
    %v209 = vmul.f32 %v206, 1.442695
    %v210 = vpow.pop %v209
    %v211 = vsel %vm198, %v208, 0.0
    %212 = vadd.xlane.f32.xlu0 %v211
    %v213 = vpop.xlane.xlu0 %212
    %v214 = vsel %vm198, %v210, 0.0
    %215 = vadd.xlane.f32.xlu0 %v214
    %v216 = vpop.xlane.xlu0 %215
    %v217 = vrcp.pop %v213
    %v218 = vrcp.pop %v216
    %v219 = vmul.f32 %v208, %v217
    %v220 = vmul.f32 %v210, %v218
    %221 = vrot.lane.b32.xlu0 %v169, 64
    %v222 = vpop.permute.xlu0 %221
    %v223 = vpack.c.b16 %v143, %v143
    %224 = vrot.lane.b32.xlu0 %v223, 32
    %v225 = vpop.permute.xlu0 %224
    %v227 = vsel %vm173, %v222, 0
    %vm229 = vcmask 1043456
    %v231 = vsel %vm229, %v225, 0
    %233 = vmatpush.bf16.msra.mxu0 0
    %234 = vmatpush.bf16.msra.mxu0 0
    %235 = vmatpush.bf16.msra.mxu0 0
    %236 = vmatpush.bf16.msra.mxu0 0
    %237 = vmatpush.bf16.msra.mxu0 0
    %238 = vmatpush.bf16.msra.mxu0 0
    %239 = vmatpush.bf16.msra.mxu0 0
    %240 = vmatpush.bf16.msra.mxu0 %v231
    %241 = vmatmul.bf16.gmra.mxu0 %v227
    %v242 = vpop.f32.mrf.mxu0
    %v243 = vadd.f32 0.0, %v242
    %v244 = vpop.f32.mrf.mxu0
    %v245 = vadd.f32 0.0, %v244
    %246 = vdwg.mxu0
    %v247 = vpack.c.bf16 %v220, %v219
    %v248 = vpack.c.bf16 %v245, %v243
    %249 = vrot.lane.b32.xlu0 %v169, 120
    %v250 = vpop.permute.xlu0 %249
    %251 = vrot.lane.b32.xlu0 %v169, 88
    %v252 = vpop.permute.xlu0 %251
    %v254 = vsel %vm173, %v250, 0
    %v257 = vsel %vm173, %v252, 0
    %259 = vmatpush.bf16.xpose.msra.mxu0 0
    %260 = vmatpush.bf16.xpose.msra.mxu0 0
    %261 = vmatpush.bf16.xpose.msra.mxu0 0
    %262 = vmatpush.bf16.xpose.msra.mxu0 0
    %263 = vmatpush.bf16.xpose.msra.mxu0 0
    %264 = vmatpush.bf16.xpose.msra.mxu0 0
    %265 = vmatpush.bf16.xpose.msra.mxu0 0
    %266 = vmatpush.bf16.xpose.msra.mxu0 %v257
    %267 = vmatmul.bf16.gmra.mxu0 %v254
    %v268 = vpop.f32.mrf.mxu0
    %v269 = vadd.f32 0.0, %v268
    %v270 = vpop.f32.mrf.mxu0
    %v271 = vadd.f32 0.0, %v270
    %272 = vdwg.mxu0
    %v273 = vmul.f32 %v269, 0.35355338
    %v274 = vmul.f32 %v271, 0.35355338
    %v275 = vadd.f32 %v273, %v130
    %v276 = vadd.f32 %v274, %v131
    %v277 = vsel %vm198, %v275, -inf
    %278 = vmax.xlane.f32.xlu0 %v277
    %v279 = vpop.xlane.xlu0 %278
    %v280 = vsel %vm198, %v276, -inf
    %281 = vmax.xlane.f32.xlu0 %v280
    %v282 = vpop.xlane.xlu0 %281
    %v283 = vsub.f32 %v275, %v279
    %v284 = vsub.f32 %v276, %v282
    %v285 = vmul.f32 %v283, 1.442695
    %v286 = vpow.pop %v285
    %v287 = vmul.f32 %v284, 1.442695
    %v288 = vpow.pop %v287
    %v289 = vsel %vm198, %v286, 0.0
    %290 = vadd.xlane.f32.xlu0 %v289
    %v291 = vpop.xlane.xlu0 %290
    %v292 = vsel %vm198, %v288, 0.0
    %293 = vadd.xlane.f32.xlu0 %v292
    %v294 = vpop.xlane.xlu0 %293
    %v295 = vrcp.pop %v291
    %v296 = vrcp.pop %v294
    %v297 = vmul.f32 %v286, %v295
    %v298 = vmul.f32 %v288, %v296
    %299 = vrot.lane.b32.xlu0 %v169, 56
    %v300 = vpop.permute.xlu0 %299
    %v301 = vpack.c.b16 %v144, %v144
    %302 = vrot.lane.b32.xlu0 %v301, 32
    %v303 = vpop.permute.xlu0 %302
    %v305 = vsel %vm173, %v300, 0
    %v308 = vsel %vm229, %v303, 0
    %310 = vmatpush.bf16.msra.mxu0 0
    %311 = vmatpush.bf16.msra.mxu0 0
    %312 = vmatpush.bf16.msra.mxu0 0
    %313 = vmatpush.bf16.msra.mxu0 0
    %314 = vmatpush.bf16.msra.mxu0 0
    %315 = vmatpush.bf16.msra.mxu0 0
    %316 = vmatpush.bf16.msra.mxu0 0
    %317 = vmatpush.bf16.msra.mxu0 %v308
    %318 = vmatmul.bf16.gmra.mxu0 %v305
    %v319 = vpop.f32.mrf.mxu0
    %v320 = vadd.f32 0.0, %v319
    %v321 = vpop.f32.mrf.mxu0
    %v322 = vadd.f32 0.0, %v321
    %323 = vdwg.mxu0
    %v324 = vpack.c.bf16 %v298, %v297
    %v325 = vpack.c.bf16 %v322, %v320
    %v327 = vsel %vm198, %v324, 0
    %329 = vmatpush.bf16.msra.mxu0 0
    %330 = vmatpush.bf16.msra.mxu0 0
    %331 = vmatpush.bf16.msra.mxu0 0
    %332 = vmatpush.bf16.msra.mxu0 0
    %333 = vmatpush.bf16.msra.mxu0 0
    %334 = vmatpush.bf16.msra.mxu0 0
    %335 = vmatpush.bf16.msra.mxu0 0
    %336 = vmatpush.bf16.msra.mxu0 %v325
    %337 = vmatmul.bf16.gmra.mxu0 %v327
    %v338 = vpop.f32.mrf.mxu0
    %v339 = vadd.f32 0.0, %v338
    %v340 = vpop.f32.mrf.mxu0
    %v341 = vadd.f32 0.0, %v340
    %342 = vdwg.mxu0
    %v344 = vsel %vm198, %v247, 0
    %346 = vmatpush.bf16.msra.mxu0 0
    %347 = vmatpush.bf16.msra.mxu0 0
    %348 = vmatpush.bf16.msra.mxu0 0
    %349 = vmatpush.bf16.msra.mxu0 0
    %350 = vmatpush.bf16.msra.mxu0 0
    %351 = vmatpush.bf16.msra.mxu0 0
    %352 = vmatpush.bf16.msra.mxu0 0
    %353 = vmatpush.bf16.msra.mxu0 %v248
    %354 = vmatmul.bf16.gmra.mxu0 %v344
    %v355 = vpop.f32.mrf.mxu0
    %v356 = vadd.f32 %v339, %v355
    %v357 = vpop.f32.mrf.mxu0
    %v358 = vadd.f32 %v341, %v357
    %359 = vdwg.mxu0
    %360 = vrot.lane.b32.xlu0 %v169, 112
    %v361 = vpop.permute.xlu0 %360
    %362 = vrot.lane.b32.xlu0 %v169, 80
    %v363 = vpop.permute.xlu0 %362
    %v365 = vsel %vm173, %v361, 0
    %v368 = vsel %vm173, %v363, 0
    %370 = vmatpush.bf16.xpose.msra.mxu0 0
    %371 = vmatpush.bf16.xpose.msra.mxu0 0
    %372 = vmatpush.bf16.xpose.msra.mxu0 0
    %373 = vmatpush.bf16.xpose.msra.mxu0 0
    %374 = vmatpush.bf16.xpose.msra.mxu0 0
    %375 = vmatpush.bf16.xpose.msra.mxu0 0
    %376 = vmatpush.bf16.xpose.msra.mxu0 0
    %377 = vmatpush.bf16.xpose.msra.mxu0 %v368
    %378 = vmatmul.bf16.gmra.mxu0 %v365
    %v379 = vpop.f32.mrf.mxu0
    %v380 = vadd.f32 0.0, %v379
    %v381 = vpop.f32.mrf.mxu0
    %v382 = vadd.f32 0.0, %v381
    %383 = vdwg.mxu0
    %v384 = vmul.f32 %v380, 0.35355338
    %v385 = vmul.f32 %v382, 0.35355338
    %v386 = vadd.f32 %v384, %v130
    %v387 = vadd.f32 %v385, %v131
    %v388 = vsel %vm198, %v386, -inf
    %389 = vmax.xlane.f32.xlu0 %v388
    %v390 = vpop.xlane.xlu0 %389
    %v391 = vsel %vm198, %v387, -inf
    %392 = vmax.xlane.f32.xlu0 %v391
    %v393 = vpop.xlane.xlu0 %392
    %v394 = vsub.f32 %v386, %v390
    %v395 = vsub.f32 %v387, %v393
    %v396 = vmul.f32 %v394, 1.442695
    %v397 = vpow.pop %v396
    %v398 = vmul.f32 %v395, 1.442695
    %v399 = vpow.pop %v398
    %v400 = vsel %vm198, %v397, 0.0
    %401 = vadd.xlane.f32.xlu0 %v400
    %v402 = vpop.xlane.xlu0 %401
    %v403 = vsel %vm198, %v399, 0.0
    %404 = vadd.xlane.f32.xlu0 %v403
    %v405 = vpop.xlane.xlu0 %404
    %v406 = vrcp.pop %v402
    %v407 = vrcp.pop %v405
    %v408 = vmul.f32 %v397, %v406
    %v409 = vmul.f32 %v399, %v407
    %410 = vrot.lane.b32.xlu0 %v169, 48
    %v411 = vpop.permute.xlu0 %410
    %v412 = vpack.c.b16 %v145, %v145
    %413 = vrot.lane.b32.xlu0 %v412, 32
    %v414 = vpop.permute.xlu0 %413
    %v416 = vsel %vm173, %v411, 0
    %v419 = vsel %vm229, %v414, 0
    %421 = vmatpush.bf16.msra.mxu0 0
    %422 = vmatpush.bf16.msra.mxu0 0
    %423 = vmatpush.bf16.msra.mxu0 0
    %424 = vmatpush.bf16.msra.mxu0 0
    %425 = vmatpush.bf16.msra.mxu0 0
    %426 = vmatpush.bf16.msra.mxu0 0
    %427 = vmatpush.bf16.msra.mxu0 0
    %428 = vmatpush.bf16.msra.mxu0 %v419
    %429 = vmatmul.bf16.gmra.mxu0 %v416
    %v430 = vpop.f32.mrf.mxu0
    %v431 = vadd.f32 0.0, %v430
    %v432 = vpop.f32.mrf.mxu0
    %v433 = vadd.f32 0.0, %v432
    %434 = vdwg.mxu0
    %v435 = vpack.c.bf16 %v409, %v408
    %v436 = vpack.c.bf16 %v433, %v431
    %v438 = vsel %vm198, %v435, 0
    %440 = vmatpush.bf16.msra.mxu0 0
    %441 = vmatpush.bf16.msra.mxu0 0
    %442 = vmatpush.bf16.msra.mxu0 0
    %443 = vmatpush.bf16.msra.mxu0 0
    %444 = vmatpush.bf16.msra.mxu0 0
    %445 = vmatpush.bf16.msra.mxu0 0
    %446 = vmatpush.bf16.msra.mxu0 0
    %447 = vmatpush.bf16.msra.mxu0 %v436
    %448 = vmatmul.bf16.gmra.mxu0 %v438
    %v449 = vpop.f32.mrf.mxu0
    %v450 = vadd.f32 0.0, %v449
    %v451 = vpop.f32.mrf.mxu0
    %v452 = vadd.f32 0.0, %v451
    %453 = vdwg.mxu0
    %v454 = vadd.f32 %v356, %v450
    %v455 = vadd.f32 %v358, %v452
    %456 = vrot.lane.b32.xlu0 %v169, 104
    %v457 = vpop.permute.xlu0 %456
    %458 = vrot.lane.b32.xlu0 %v169, 72
    %v459 = vpop.permute.xlu0 %458
    %v461 = vsel %vm173, %v457, 0
    %v464 = vsel %vm173, %v459, 0
    %466 = vmatpush.bf16.xpose.msra.mxu0 0
    %467 = vmatpush.bf16.xpose.msra.mxu0 0
    %468 = vmatpush.bf16.xpose.msra.mxu0 0
    %469 = vmatpush.bf16.xpose.msra.mxu0 0
    %470 = vmatpush.bf16.xpose.msra.mxu0 0
    %471 = vmatpush.bf16.xpose.msra.mxu0 0
    %472 = vmatpush.bf16.xpose.msra.mxu0 0
    %473 = vmatpush.bf16.xpose.msra.mxu0 %v464
    %474 = vmatmul.bf16.gmra.mxu0 %v461
    %v475 = vpop.f32.mrf.mxu0
    %v476 = vadd.f32 0.0, %v475
    %v477 = vpop.f32.mrf.mxu0
    %v478 = vadd.f32 0.0, %v477
    %479 = vdwg.mxu0
    %v480 = vmul.f32 %v476, 0.35355338
    %v481 = vmul.f32 %v478, 0.35355338
    %v482 = vadd.f32 %v480, %v130
    %v483 = vadd.f32 %v481, %v131
    %v484 = vsel %vm198, %v482, -inf
    %485 = vmax.xlane.f32.xlu0 %v484
    %v486 = vpop.xlane.xlu0 %485
    %v487 = vsel %vm198, %v483, -inf
    %488 = vmax.xlane.f32.xlu0 %v487
    %v489 = vpop.xlane.xlu0 %488
    %v490 = vsub.f32 %v482, %v486
    %v491 = vsub.f32 %v483, %v489
    %v492 = vmul.f32 %v490, 1.442695
    %v493 = vpow.pop %v492
    %v494 = vmul.f32 %v491, 1.442695
    %v495 = vpow.pop %v494
    %v496 = vsel %vm198, %v493, 0.0
    %497 = vadd.xlane.f32.xlu0 %v496
    %v498 = vpop.xlane.xlu0 %497
    %v499 = vsel %vm198, %v495, 0.0
    %500 = vadd.xlane.f32.xlu0 %v499
    %v501 = vpop.xlane.xlu0 %500
    %v502 = vrcp.pop %v498
    %v503 = vrcp.pop %v501
    %v504 = vmul.f32 %v493, %v502
    %v505 = vmul.f32 %v495, %v503
    %506 = vrot.lane.b32.xlu0 %v169, 40
    %v507 = vpop.permute.xlu0 %506
    %v508 = vpack.c.b16 %v146, %v146
    %509 = vrot.lane.b32.xlu0 %v508, 32
    %v510 = vpop.permute.xlu0 %509
    %v512 = vsel %vm173, %v507, 0
    %v515 = vsel %vm229, %v510, 0
    %517 = vmatpush.bf16.msra.mxu0 0
    %518 = vmatpush.bf16.msra.mxu0 0
    %519 = vmatpush.bf16.msra.mxu0 0
    %520 = vmatpush.bf16.msra.mxu0 0
    %521 = vmatpush.bf16.msra.mxu0 0
    %522 = vmatpush.bf16.msra.mxu0 0
    %523 = vmatpush.bf16.msra.mxu0 0
    %524 = vmatpush.bf16.msra.mxu0 %v515
    %525 = vmatmul.bf16.gmra.mxu0 %v512
    %v526 = vpop.f32.mrf.mxu0
    %v527 = vadd.f32 0.0, %v526
    %v528 = vpop.f32.mrf.mxu0
    %v529 = vadd.f32 0.0, %v528
    %530 = vdwg.mxu0
    %v531 = vpack.c.bf16 %v505, %v504
    %v532 = vpack.c.bf16 %v529, %v527
    %v534 = vsel %vm198, %v531, 0
    %536 = vmatpush.bf16.msra.mxu0 0
    %537 = vmatpush.bf16.msra.mxu0 0
    %538 = vmatpush.bf16.msra.mxu0 0
    %539 = vmatpush.bf16.msra.mxu0 0
    %540 = vmatpush.bf16.msra.mxu0 0
    %541 = vmatpush.bf16.msra.mxu0 0
    %542 = vmatpush.bf16.msra.mxu0 0
    %543 = vmatpush.bf16.msra.mxu0 %v532
    %544 = vmatmul.bf16.gmra.mxu0 %v534
    %v545 = vpop.f32.mrf.mxu0
    %v546 = vadd.f32 0.0, %v545
    %v547 = vpop.f32.mrf.mxu0
    %v548 = vadd.f32 0.0, %v547
    %549 = vdwg.mxu0
    %v550 = vadd.f32 %v454, %v546
    %v551 = vadd.f32 %v455, %v548
    %v552 = vperm.slane %v136, 1
    %v553 = vadd.f32 %v550, %v552
    %v554 = vadd.f32 %v551, %v552
    %v555 = vadd.f32 %v118, %v553
    %v556 = vadd.f32 %v120, %v554
    %v557 = vsel %vm151, %v555, 0.0
    %558 = vadd.xlane.f32.xlu0 %v557
    %v559 = vpop.xlane.xlu0 %558
    %v560 = vsel %vm151, %v556, 0.0
    %561 = vadd.xlane.f32.xlu0 %v560
    %v562 = vpop.xlane.xlu0 %561
    %v563 = vrcp.pop 32.0
    %v564 = vmul.f32 32.0, %v563
    %v565 = vsub.f32 1.0, %v564
    %v566 = vmul.f32 %v563, %v565
    %v567 = vadd.f32 %v563, %v566
    %vm568 = vweird.f32 %v563
    %v569 = vsel %vm568, %v563, %v567
    %v570 = vmul.f32 %v559, %v569
    %v571 = vmul.f32 %v562, %v569
    %v572 = vsub.f32 %v555, %v570
    %v573 = vsub.f32 %v556, %v571
    %v574 = vmul.f32 %v572, %v572
    %v575 = vmul.f32 %v573, %v573
    %v576 = vsel %vm151, %v574, 0.0
    %577 = vadd.xlane.f32.xlu0 %v576
    %v578 = vpop.xlane.xlu0 %577
    %v579 = vsel %vm151, %v575, 0.0
    %580 = vadd.xlane.f32.xlu0 %v579
    %v581 = vpop.xlane.xlu0 %580
    %v582 = vmul.f32 %v578, %v569
    %v583 = vmul.f32 %v581, %v569
    %v584 = vadd.f32 %v582, 1e-12
    %v585 = vadd.f32 %v583, 1e-12
    %v586 = vrsqrt.pop %v584
    %v587 = vmul.f32 %v586, %v584
    %v588 = vmul.f32 %v587, %v586
    %v589 = vmul.f32 0.5, %v588
    %v590 = vsub.f32 1.5, %v589
    %v591 = vmul.f32 %v586, %v590
    %vm592 = vweird.f32 %v584
    %vm593 = vweird.f32 %v586
    %vm594 = vmor %vm592, %vm593
    %v595 = vsel %vm594, %v586, %v591
    %v596 = vrsqrt.pop %v585
    %v597 = vmul.f32 %v596, %v585
    %v598 = vmul.f32 %v597, %v596
    %v599 = vmul.f32 0.5, %v598
    %v600 = vsub.f32 1.5, %v599
    %v601 = vmul.f32 %v596, %v600
    %vm602 = vweird.f32 %v585
    %vm603 = vweird.f32 %v596
    %vm604 = vmor %vm602, %vm603
    %v605 = vsel %vm604, %v596, %v601
    %v606 = vmul.f32 %v572, %v595
    %v607 = vmul.f32 %v573, %v605
    %v608 = vperm.slane %v136, 4
    %v609 = vmul.f32 %v606, %v608
    %v610 = vmul.f32 %v607, %v608
    %v611 = vperm.slane %v136, 5
    %v612 = vadd.f32 %v609, %v611
    %v613 = vadd.f32 %v610, %v611
    %v614 = vpack.c.bf16 %v613, %v612
    %v615 = vperm.slane %v136, 2
    %v616 = vunpack.c.h.b16 %v132
    %v617 = vunpack.c.h.b16 %v133
    %v618 = vunpack.c.h.b16 %v134
    %v619 = vunpack.c.h.b16 %v135
    %v620 = vpack.c.b16 %v617, %v616
    %v621 = vpack.c.b16 %v619, %v618
    %v625 = vsel %vm151, %v614, 0
    %627 = vmatpush.bf16.msra.mxu0 0
    %628 = vmatpush.bf16.msra.mxu0 0
    %629 = vmatpush.bf16.msra.mxu0 0
    %630 = vmatpush.bf16.msra.mxu0 0
    %631 = vmatpush.bf16.msra.mxu0 0
    %632 = vmatpush.bf16.msra.mxu0 0
    %633 = vmatpush.bf16.msra.mxu0 %v621
    %634 = vmatpush.bf16.msra.mxu0 %v620
    %635 = vmatmul.bf16.gmra.mxu0 %v625
    %v636 = vpop.f32.mrf.mxu0
    %v637 = vadd.f32 %v615, %v636
    %v638 = vpop.f32.mrf.mxu0
    %v639 = vadd.f32 %v615, %v638
    %640 = vdwg.mxu0
    %v641 = vmul.f32 %v637, %v637
    %v642 = vmul.f32 %v639, %v639
    %v643 = vmul.f32 %v637, %v641
    %v644 = vmul.f32 %v639, %v642
    %v645 = vmul.f32 %v643, 0.044715
    %v646 = vmul.f32 %v644, 0.044715
    %v647 = vadd.f32 %v637, %v645
    %v648 = vadd.f32 %v639, %v646
    %v649 = vmul.f32 %v647, 0.7978846
    %v650 = vmul.f32 %v648, 0.7978846
    %v651 = vtanh.pop %v649
    %v652 = vtanh.pop %v650
    %v653 = vadd.f32 %v651, 1.0
    %v654 = vadd.f32 %v652, 1.0
    %v655 = vmul.f32 %v653, 0.5
    %v656 = vmul.f32 %v654, 0.5
    %v657 = vmul.f32 %v637, %v655
    %v658 = vmul.f32 %v639, %v656
    %v659 = vpack.c.bf16 %v658, %v657
    %v660 = vld [vmem:[%s3] sm:$0xf]
    %v661 = vld [vmem:[%s3 + $0x4] sm:$0xf]
    %v662 = vld [vmem:[%s3 + $0x8] sm:$0xf]
    %v663 = vld [vmem:[%s3 + $0xc] sm:$0xf]
    %v664 = vld [vmem:[%s3 + $0x10] sm:$0xf]
    %v665 = vld [vmem:[%s3 + $0x14] sm:$0xf]
    %v666 = vld [vmem:[%s3 + $0x18] sm:$0xf]
    %v667 = vld [vmem:[%s3 + $0x1c] sm:$0xf]
    %v668 = vperm.slane %v136, 3
    %v677 = vunpack.c.l.b16 %v660
    %v678 = vunpack.c.l.b16 %v661
    %v679 = vunpack.c.l.b16 %v662
    %v680 = vunpack.c.l.b16 %v663
    %v681 = vunpack.c.l.b16 %v664
    %v682 = vunpack.c.l.b16 %v665
    %v683 = vunpack.c.l.b16 %v666
    %v684 = vunpack.c.l.b16 %v667
    %v685 = vpack.c.b16 %v678, %v677
    %v686 = vpack.c.b16 %v680, %v679
    %v687 = vpack.c.b16 %v682, %v681
    %v688 = vpack.c.b16 %v684, %v683
    %vm693 = vcmask 523264
    %v695 = vsel %vm693, %v659, 0
    %697 = vmatpush.bf16.msra.mxu0 0
    %698 = vmatpush.bf16.msra.mxu0 0
    %699 = vmatpush.bf16.msra.mxu0 0
    %700 = vmatpush.bf16.msra.mxu0 0
    %701 = vmatpush.bf16.msra.mxu0 %v688
    %702 = vmatpush.bf16.msra.mxu0 %v687
    %703 = vmatpush.bf16.msra.mxu0 %v686
    %704 = vmatpush.bf16.msra.mxu0 %v685
    %705 = vmatmul.bf16.gmra.mxu0 %v695
    %v706 = vpop.f32.mrf.mxu0
    %v707 = vadd.f32 %v668, %v706
    %v708 = vpop.f32.mrf.mxu0
    %v709 = vadd.f32 %v668, %v708
    %710 = vdwg.mxu0
    %v711 = vadd.f32 %v612, %v707
    %v712 = vadd.f32 %v613, %v709
    %v713 = vsel %vm151, %v711, 0.0
    %714 = vadd.xlane.f32.xlu0 %v713
    %v715 = vpop.xlane.xlu0 %714
    %v716 = vsel %vm151, %v712, 0.0
    %717 = vadd.xlane.f32.xlu0 %v716
    %v718 = vpop.xlane.xlu0 %717
    %v719 = vmul.f32 %v715, %v569
    %v720 = vmul.f32 %v718, %v569
    %v721 = vsub.f32 %v711, %v719
    %v722 = vsub.f32 %v712, %v720
    %v723 = vmul.f32 %v721, %v721
    %v724 = vmul.f32 %v722, %v722
    %v725 = vsel %vm151, %v723, 0.0
    %726 = vadd.xlane.f32.xlu0 %v725
    %v727 = vpop.xlane.xlu0 %726
    %v728 = vsel %vm151, %v724, 0.0
    %729 = vadd.xlane.f32.xlu0 %v728
    %v730 = vpop.xlane.xlu0 %729
    %v731 = vmul.f32 %v727, %v569
    %v732 = vmul.f32 %v730, %v569
    %v733 = vadd.f32 %v731, 1e-12
    %v734 = vadd.f32 %v732, 1e-12
    %v735 = vrsqrt.pop %v733
    %v736 = vmul.f32 %v735, %v733
    %v737 = vmul.f32 %v736, %v735
    %v738 = vmul.f32 0.5, %v737
    %v739 = vsub.f32 1.5, %v738
    %v740 = vmul.f32 %v735, %v739
    %vm741 = vweird.f32 %v733
    %vm742 = vweird.f32 %v735
    %vm743 = vmor %vm741, %vm742
    %v744 = vsel %vm743, %v735, %v740
    %v745 = vrsqrt.pop %v734
    %v746 = vmul.f32 %v745, %v734
    %v747 = vmul.f32 %v746, %v745
    %v748 = vmul.f32 0.5, %v747
    %v749 = vsub.f32 1.5, %v748
    %v750 = vmul.f32 %v745, %v749
    %vm751 = vweird.f32 %v734
    %vm752 = vweird.f32 %v745
    %vm753 = vmor %vm751, %vm752
    %v754 = vsel %vm753, %v745, %v750
    %v755 = vmul.f32 %v721, %v744
    %v756 = vmul.f32 %v722, %v754
    %v757 = vperm.slane %v136, 6
    %v758 = vmul.f32 %v755, %v757
    %v759 = vmul.f32 %v756, %v757
    %v760 = vperm.slane %v136, 7
    %v761 = vadd.f32 %v758, %v760
    %v762 = vadd.f32 %v759, %v760
    %s763 = scalar_lea.vmem %s2, 32
    %v764 = vld [vmem:[%s763] sm:$0xff]
    %v765 = vld [vmem:[%s763 + $0x8] sm:$0xff]
    %v766 = vld [vmem:[%s763 + $0x10] sm:$0xff]
    %v767 = vld [vmem:[%s763 + $0x18] sm:$0xff]
    %s768 = scalar_lea.vmem %s4, 8
    %v769 = vld [vmem:[%s768] sm:$0xff]
    %v770 = vpack.c.bf16 %v762, %v761
    %v771 = vperm.slane %v769, 0
    %v776 = vunpack.c.l.b16 %v764
    %v777 = vunpack.c.l.b16 %v765
    %v778 = vunpack.c.l.b16 %v766
    %v779 = vunpack.c.l.b16 %v767
    %v780 = vpack.c.b16 %v777, %v776
    %v781 = vpack.c.b16 %v779, %v778
    %v785 = vsel %vm151, %v770, 0
    %787 = vmatpush.bf16.msra.mxu0 0
    %788 = vmatpush.bf16.msra.mxu0 0
    %789 = vmatpush.bf16.msra.mxu0 0
    %790 = vmatpush.bf16.msra.mxu0 0
    %791 = vmatpush.bf16.msra.mxu0 0
    %792 = vmatpush.bf16.msra.mxu0 0
    %793 = vmatpush.bf16.msra.mxu0 %v781
    %794 = vmatpush.bf16.msra.mxu0 %v780
    %795 = vmatmul.bf16.gmra.mxu0 %v785
    %v796 = vpop.f32.mrf.mxu0
    %v797 = vadd.f32 %v771, %v796
    %v798 = vpop.f32.mrf.mxu0
    %v799 = vadd.f32 %v771, %v798
    %800 = vdwg.mxu0
    %v801 = vpack.c.bf16 %v799, %v797
    %803 = vrot.lane.b32.xlu0 %v801, 96
    %v804 = vpop.permute.xlu0 %803
    %v806 = vsel %vm173, %v801, 0
    %v809 = vsel %vm173, %v804, 0
    %811 = vmatpush.bf16.xpose.msra.mxu0 0
    %812 = vmatpush.bf16.xpose.msra.mxu0 0
    %813 = vmatpush.bf16.xpose.msra.mxu0 0
    %814 = vmatpush.bf16.xpose.msra.mxu0 0
    %815 = vmatpush.bf16.xpose.msra.mxu0 0
    %816 = vmatpush.bf16.xpose.msra.mxu0 0
    %817 = vmatpush.bf16.xpose.msra.mxu0 0
    %818 = vmatpush.bf16.xpose.msra.mxu0 %v809
    %819 = vmatmul.bf16.gmra.mxu0 %v806
    %v820 = vpop.f32.mrf.mxu0
    %v821 = vadd.f32 0.0, %v820
    %v822 = vpop.f32.mrf.mxu0
    %v823 = vadd.f32 0.0, %v822
    %824 = vdwg.mxu0
    %v825 = vmul.f32 %v821, 0.35355338
    %v826 = vmul.f32 %v823, 0.35355338
    %v827 = vadd.f32 %v825, %v130
    %v828 = vadd.f32 %v826, %v131
    %v829 = vsel %vm198, %v827, -inf
    %830 = vmax.xlane.f32.xlu0 %v829
    %v831 = vpop.xlane.xlu0 %830
    %v832 = vsel %vm198, %v828, -inf
    %833 = vmax.xlane.f32.xlu0 %v832
    %v834 = vpop.xlane.xlu0 %833
    %v835 = vsub.f32 %v827, %v831
    %v836 = vsub.f32 %v828, %v834
    %v837 = vmul.f32 %v835, 1.442695
    %v838 = vpow.pop %v837
    %v839 = vmul.f32 %v836, 1.442695
    %v840 = vpow.pop %v839
    %v841 = vsel %vm198, %v838, 0.0
    %842 = vadd.xlane.f32.xlu0 %v841
    %v843 = vpop.xlane.xlu0 %842
    %v844 = vsel %vm198, %v840, 0.0
    %845 = vadd.xlane.f32.xlu0 %v844
    %v846 = vpop.xlane.xlu0 %845
    %v847 = vrcp.pop %v843
    %v848 = vrcp.pop %v846
    %v849 = vmul.f32 %v838, %v847
    %v850 = vmul.f32 %v840, %v848
    %851 = vrot.lane.b32.xlu0 %v801, 64
    %v852 = vpop.permute.xlu0 %851
    %v853 = vpack.c.b16 %v776, %v776
    %854 = vrot.lane.b32.xlu0 %v853, 32
    %v855 = vpop.permute.xlu0 %854
    %v857 = vsel %vm173, %v852, 0
    %v860 = vsel %vm229, %v855, 0
    %862 = vmatpush.bf16.msra.mxu0 0
    %863 = vmatpush.bf16.msra.mxu0 0
    %864 = vmatpush.bf16.msra.mxu0 0
    %865 = vmatpush.bf16.msra.mxu0 0
    %866 = vmatpush.bf16.msra.mxu0 0
    %867 = vmatpush.bf16.msra.mxu0 0
    %868 = vmatpush.bf16.msra.mxu0 0
    %869 = vmatpush.bf16.msra.mxu0 %v860
    %870 = vmatmul.bf16.gmra.mxu0 %v857
    %v871 = vpop.f32.mrf.mxu0
    %v872 = vadd.f32 0.0, %v871
    %v873 = vpop.f32.mrf.mxu0
    %v874 = vadd.f32 0.0, %v873
    %875 = vdwg.mxu0
    %v876 = vpack.c.bf16 %v850, %v849
    %v877 = vpack.c.bf16 %v874, %v872
    %878 = vrot.lane.b32.xlu0 %v801, 120
    %v879 = vpop.permute.xlu0 %878
    %880 = vrot.lane.b32.xlu0 %v801, 88
    %v881 = vpop.permute.xlu0 %880
    %v883 = vsel %vm173, %v879, 0
    %v886 = vsel %vm173, %v881, 0
    %888 = vmatpush.bf16.xpose.msra.mxu0 0
    %889 = vmatpush.bf16.xpose.msra.mxu0 0
    %890 = vmatpush.bf16.xpose.msra.mxu0 0
    %891 = vmatpush.bf16.xpose.msra.mxu0 0
    %892 = vmatpush.bf16.xpose.msra.mxu0 0
    %893 = vmatpush.bf16.xpose.msra.mxu0 0
    %894 = vmatpush.bf16.xpose.msra.mxu0 0
    %895 = vmatpush.bf16.xpose.msra.mxu0 %v886
    %896 = vmatmul.bf16.gmra.mxu0 %v883
    %v897 = vpop.f32.mrf.mxu0
    %v898 = vadd.f32 0.0, %v897
    %v899 = vpop.f32.mrf.mxu0
    %v900 = vadd.f32 0.0, %v899
    %901 = vdwg.mxu0
    %v902 = vmul.f32 %v898, 0.35355338
    %v903 = vmul.f32 %v900, 0.35355338
    %v904 = vadd.f32 %v902, %v130
    %v905 = vadd.f32 %v903, %v131
    %v906 = vsel %vm198, %v904, -inf
    %907 = vmax.xlane.f32.xlu0 %v906
    %v908 = vpop.xlane.xlu0 %907
    %v909 = vsel %vm198, %v905, -inf
    %910 = vmax.xlane.f32.xlu0 %v909
    %v911 = vpop.xlane.xlu0 %910
    %v912 = vsub.f32 %v904, %v908
    %v913 = vsub.f32 %v905, %v911
    %v914 = vmul.f32 %v912, 1.442695
    %v915 = vpow.pop %v914
    %v916 = vmul.f32 %v913, 1.442695
    %v917 = vpow.pop %v916
    %v918 = vsel %vm198, %v915, 0.0
    %919 = vadd.xlane.f32.xlu0 %v918
    %v920 = vpop.xlane.xlu0 %919
    %v921 = vsel %vm198, %v917, 0.0
    %922 = vadd.xlane.f32.xlu0 %v921
    %v923 = vpop.xlane.xlu0 %922
    %v924 = vrcp.pop %v920
    %v925 = vrcp.pop %v923
    %v926 = vmul.f32 %v915, %v924
    %v927 = vmul.f32 %v917, %v925
    %928 = vrot.lane.b32.xlu0 %v801, 56
    %v929 = vpop.permute.xlu0 %928
    %v930 = vpack.c.b16 %v777, %v777
    %931 = vrot.lane.b32.xlu0 %v930, 32
    %v932 = vpop.permute.xlu0 %931
    %v934 = vsel %vm173, %v929, 0
    %v937 = vsel %vm229, %v932, 0
    %939 = vmatpush.bf16.msra.mxu0 0
    %940 = vmatpush.bf16.msra.mxu0 0
    %941 = vmatpush.bf16.msra.mxu0 0
    %942 = vmatpush.bf16.msra.mxu0 0
    %943 = vmatpush.bf16.msra.mxu0 0
    %944 = vmatpush.bf16.msra.mxu0 0
    %945 = vmatpush.bf16.msra.mxu0 0
    %946 = vmatpush.bf16.msra.mxu0 %v937
    %947 = vmatmul.bf16.gmra.mxu0 %v934
    %v948 = vpop.f32.mrf.mxu0
    %v949 = vadd.f32 0.0, %v948
    %v950 = vpop.f32.mrf.mxu0
    %v951 = vadd.f32 0.0, %v950
    %952 = vdwg.mxu0
    %v953 = vpack.c.bf16 %v927, %v926
    %v954 = vpack.c.bf16 %v951, %v949
    %v956 = vsel %vm198, %v953, 0
    %958 = vmatpush.bf16.msra.mxu0 0
    %959 = vmatpush.bf16.msra.mxu0 0
    %960 = vmatpush.bf16.msra.mxu0 0
    %961 = vmatpush.bf16.msra.mxu0 0
    %962 = vmatpush.bf16.msra.mxu0 0
    %963 = vmatpush.bf16.msra.mxu0 0
    %964 = vmatpush.bf16.msra.mxu0 0
    %965 = vmatpush.bf16.msra.mxu0 %v954
    %966 = vmatmul.bf16.gmra.mxu0 %v956
    %v967 = vpop.f32.mrf.mxu0
    %v968 = vadd.f32 0.0, %v967
    %v969 = vpop.f32.mrf.mxu0
    %v970 = vadd.f32 0.0, %v969
    %971 = vdwg.mxu0
    %v973 = vsel %vm198, %v876, 0
    %975 = vmatpush.bf16.msra.mxu0 0
    %976 = vmatpush.bf16.msra.mxu0 0
    %977 = vmatpush.bf16.msra.mxu0 0
    %978 = vmatpush.bf16.msra.mxu0 0
    %979 = vmatpush.bf16.msra.mxu0 0
    %980 = vmatpush.bf16.msra.mxu0 0
    %981 = vmatpush.bf16.msra.mxu0 0
    %982 = vmatpush.bf16.msra.mxu0 %v877
    %983 = vmatmul.bf16.gmra.mxu0 %v973
    %v984 = vpop.f32.mrf.mxu0
    %v985 = vadd.f32 %v968, %v984
    %v986 = vpop.f32.mrf.mxu0
    %v987 = vadd.f32 %v970, %v986
    %988 = vdwg.mxu0
    %989 = vrot.lane.b32.xlu0 %v801, 112
    %v990 = vpop.permute.xlu0 %989
    %991 = vrot.lane.b32.xlu0 %v801, 80
    %v992 = vpop.permute.xlu0 %991
    %v994 = vsel %vm173, %v990, 0
    %v997 = vsel %vm173, %v992, 0
    %999 = vmatpush.bf16.xpose.msra.mxu0 0
    %1000 = vmatpush.bf16.xpose.msra.mxu0 0
    %1001 = vmatpush.bf16.xpose.msra.mxu0 0
    %1002 = vmatpush.bf16.xpose.msra.mxu0 0
    %1003 = vmatpush.bf16.xpose.msra.mxu0 0
    %1004 = vmatpush.bf16.xpose.msra.mxu0 0
    %1005 = vmatpush.bf16.xpose.msra.mxu0 0
    %1006 = vmatpush.bf16.xpose.msra.mxu0 %v997
    %1007 = vmatmul.bf16.gmra.mxu0 %v994
    %v1008 = vpop.f32.mrf.mxu0
    %v1009 = vadd.f32 0.0, %v1008
    %v1010 = vpop.f32.mrf.mxu0
    %v1011 = vadd.f32 0.0, %v1010
    %1012 = vdwg.mxu0
    %v1013 = vmul.f32 %v1009, 0.35355338
    %v1014 = vmul.f32 %v1011, 0.35355338
    %v1015 = vadd.f32 %v1013, %v130
    %v1016 = vadd.f32 %v1014, %v131
    %v1017 = vsel %vm198, %v1015, -inf
    %1018 = vmax.xlane.f32.xlu0 %v1017
    %v1019 = vpop.xlane.xlu0 %1018
    %v1020 = vsel %vm198, %v1016, -inf
    %1021 = vmax.xlane.f32.xlu0 %v1020
    %v1022 = vpop.xlane.xlu0 %1021
    %v1023 = vsub.f32 %v1015, %v1019
    %v1024 = vsub.f32 %v1016, %v1022
    %v1025 = vmul.f32 %v1023, 1.442695
    %v1026 = vpow.pop %v1025
    %v1027 = vmul.f32 %v1024, 1.442695
    %v1028 = vpow.pop %v1027
    %v1029 = vsel %vm198, %v1026, 0.0
    %1030 = vadd.xlane.f32.xlu0 %v1029
    %v1031 = vpop.xlane.xlu0 %1030
    %v1032 = vsel %vm198, %v1028, 0.0
    %1033 = vadd.xlane.f32.xlu0 %v1032
    %v1034 = vpop.xlane.xlu0 %1033
    %v1035 = vrcp.pop %v1031
    %v1036 = vrcp.pop %v1034
    %v1037 = vmul.f32 %v1026, %v1035
    %v1038 = vmul.f32 %v1028, %v1036
    %1039 = vrot.lane.b32.xlu0 %v801, 48
    %v1040 = vpop.permute.xlu0 %1039
    %v1041 = vpack.c.b16 %v778, %v778
    %1042 = vrot.lane.b32.xlu0 %v1041, 32
    %v1043 = vpop.permute.xlu0 %1042
    %v1045 = vsel %vm173, %v1040, 0
    %v1048 = vsel %vm229, %v1043, 0
    %1050 = vmatpush.bf16.msra.mxu0 0
    %1051 = vmatpush.bf16.msra.mxu0 0
    %1052 = vmatpush.bf16.msra.mxu0 0
    %1053 = vmatpush.bf16.msra.mxu0 0
    %1054 = vmatpush.bf16.msra.mxu0 0
    %1055 = vmatpush.bf16.msra.mxu0 0
    %1056 = vmatpush.bf16.msra.mxu0 0
    %1057 = vmatpush.bf16.msra.mxu0 %v1048
    %1058 = vmatmul.bf16.gmra.mxu0 %v1045
    %v1059 = vpop.f32.mrf.mxu0
    %v1060 = vadd.f32 0.0, %v1059
    %v1061 = vpop.f32.mrf.mxu0
    %v1062 = vadd.f32 0.0, %v1061
    %1063 = vdwg.mxu0
    %v1064 = vpack.c.bf16 %v1038, %v1037
    %v1065 = vpack.c.bf16 %v1062, %v1060
    %v1067 = vsel %vm198, %v1064, 0
    %1069 = vmatpush.bf16.msra.mxu0 0
    %1070 = vmatpush.bf16.msra.mxu0 0
    %1071 = vmatpush.bf16.msra.mxu0 0
    %1072 = vmatpush.bf16.msra.mxu0 0
    %1073 = vmatpush.bf16.msra.mxu0 0
    %1074 = vmatpush.bf16.msra.mxu0 0
    %1075 = vmatpush.bf16.msra.mxu0 0
    %1076 = vmatpush.bf16.msra.mxu0 %v1065
    %1077 = vmatmul.bf16.gmra.mxu0 %v1067
    %v1078 = vpop.f32.mrf.mxu0
    %v1079 = vadd.f32 0.0, %v1078
    %v1080 = vpop.f32.mrf.mxu0
    %v1081 = vadd.f32 0.0, %v1080
    %1082 = vdwg.mxu0
    %v1083 = vadd.f32 %v985, %v1079
    %v1084 = vadd.f32 %v987, %v1081
    %1085 = vrot.lane.b32.xlu0 %v801, 104
    %v1086 = vpop.permute.xlu0 %1085
    %1087 = vrot.lane.b32.xlu0 %v801, 72
    %v1088 = vpop.permute.xlu0 %1087
    %v1090 = vsel %vm173, %v1086, 0
    %v1093 = vsel %vm173, %v1088, 0
    %1095 = vmatpush.bf16.xpose.msra.mxu0 0
    %1096 = vmatpush.bf16.xpose.msra.mxu0 0
    %1097 = vmatpush.bf16.xpose.msra.mxu0 0
    %1098 = vmatpush.bf16.xpose.msra.mxu0 0
    %1099 = vmatpush.bf16.xpose.msra.mxu0 0
    %1100 = vmatpush.bf16.xpose.msra.mxu0 0
    %1101 = vmatpush.bf16.xpose.msra.mxu0 0
    %1102 = vmatpush.bf16.xpose.msra.mxu0 %v1093
    %1103 = vmatmul.bf16.gmra.mxu0 %v1090
    %v1104 = vpop.f32.mrf.mxu0
    %v1105 = vadd.f32 0.0, %v1104
    %v1106 = vpop.f32.mrf.mxu0
    %v1107 = vadd.f32 0.0, %v1106
    %1108 = vdwg.mxu0
    %v1109 = vmul.f32 %v1105, 0.35355338
    %v1110 = vmul.f32 %v1107, 0.35355338
    %v1111 = vadd.f32 %v1109, %v130
    %v1112 = vadd.f32 %v1110, %v131
    %v1113 = vsel %vm198, %v1111, -inf
    %1114 = vmax.xlane.f32.xlu0 %v1113
    %v1115 = vpop.xlane.xlu0 %1114
    %v1116 = vsel %vm198, %v1112, -inf
    %1117 = vmax.xlane.f32.xlu0 %v1116
    %v1118 = vpop.xlane.xlu0 %1117
    %v1119 = vsub.f32 %v1111, %v1115
    %v1120 = vsub.f32 %v1112, %v1118
    %v1121 = vmul.f32 %v1119, 1.442695
    %v1122 = vpow.pop %v1121
    %v1123 = vmul.f32 %v1120, 1.442695
    %v1124 = vpow.pop %v1123
    %v1125 = vsel %vm198, %v1122, 0.0
    %1126 = vadd.xlane.f32.xlu0 %v1125
    %v1127 = vpop.xlane.xlu0 %1126
    %v1128 = vsel %vm198, %v1124, 0.0
    %1129 = vadd.xlane.f32.xlu0 %v1128
    %v1130 = vpop.xlane.xlu0 %1129
    %v1131 = vrcp.pop %v1127
    %v1132 = vrcp.pop %v1130
    %v1133 = vmul.f32 %v1122, %v1131
    %v1134 = vmul.f32 %v1124, %v1132
    %1135 = vrot.lane.b32.xlu0 %v801, 40
    %v1136 = vpop.permute.xlu0 %1135
    %v1137 = vpack.c.b16 %v779, %v779
    %1138 = vrot.lane.b32.xlu0 %v1137, 32
    %v1139 = vpop.permute.xlu0 %1138
    %v1141 = vsel %vm173, %v1136, 0
    %v1144 = vsel %vm229, %v1139, 0
    %1146 = vmatpush.bf16.msra.mxu0 0
    %1147 = vmatpush.bf16.msra.mxu0 0
    %1148 = vmatpush.bf16.msra.mxu0 0
    %1149 = vmatpush.bf16.msra.mxu0 0
    %1150 = vmatpush.bf16.msra.mxu0 0
    %1151 = vmatpush.bf16.msra.mxu0 0
    %1152 = vmatpush.bf16.msra.mxu0 0
    %1153 = vmatpush.bf16.msra.mxu0 %v1144
    %1154 = vmatmul.bf16.gmra.mxu0 %v1141
    %v1155 = vpop.f32.mrf.mxu0
    %v1156 = vadd.f32 0.0, %v1155
    %v1157 = vpop.f32.mrf.mxu0
    %v1158 = vadd.f32 0.0, %v1157
    %1159 = vdwg.mxu0
    %v1160 = vpack.c.bf16 %v1134, %v1133
    %v1161 = vpack.c.bf16 %v1158, %v1156
    %v1163 = vsel %vm198, %v1160, 0
    %1165 = vmatpush.bf16.msra.mxu0 0
    %1166 = vmatpush.bf16.msra.mxu0 0
    %1167 = vmatpush.bf16.msra.mxu0 0
    %1168 = vmatpush.bf16.msra.mxu0 0
    %1169 = vmatpush.bf16.msra.mxu0 0
    %1170 = vmatpush.bf16.msra.mxu0 0
    %1171 = vmatpush.bf16.msra.mxu0 0
    %1172 = vmatpush.bf16.msra.mxu0 %v1161
    %1173 = vmatmul.bf16.gmra.mxu0 %v1163
    %v1174 = vpop.f32.mrf.mxu0
    %v1175 = vadd.f32 0.0, %v1174
    %v1176 = vpop.f32.mrf.mxu0
    %v1177 = vadd.f32 0.0, %v1176
    %1178 = vdwg.mxu0
    %v1179 = vadd.f32 %v1083, %v1175
    %v1180 = vadd.f32 %v1084, %v1177
    %v1181 = vperm.slane %v769, 1
    %v1182 = vadd.f32 %v1179, %v1181
    %v1183 = vadd.f32 %v1180, %v1181
    %v1184 = vadd.f32 %v761, %v1182
    %v1185 = vadd.f32 %v762, %v1183
    %v1186 = vsel %vm151, %v1184, 0.0
    %1187 = vadd.xlane.f32.xlu0 %v1186
    %v1188 = vpop.xlane.xlu0 %1187
    %v1189 = vsel %vm151, %v1185, 0.0
    %1190 = vadd.xlane.f32.xlu0 %v1189
    %v1191 = vpop.xlane.xlu0 %1190
    %v1192 = vmul.f32 %v1188, %v569
    %v1193 = vmul.f32 %v1191, %v569
    %v1194 = vsub.f32 %v1184, %v1192
    %v1195 = vsub.f32 %v1185, %v1193
    %v1196 = vmul.f32 %v1194, %v1194
    %v1197 = vmul.f32 %v1195, %v1195
    %v1198 = vsel %vm151, %v1196, 0.0
    %1199 = vadd.xlane.f32.xlu0 %v1198
    %v1200 = vpop.xlane.xlu0 %1199
    %v1201 = vsel %vm151, %v1197, 0.0
    %1202 = vadd.xlane.f32.xlu0 %v1201
    %v1203 = vpop.xlane.xlu0 %1202
    %v1204 = vmul.f32 %v1200, %v569
    %v1205 = vmul.f32 %v1203, %v569
    %v1206 = vadd.f32 %v1204, 1e-12
    %v1207 = vadd.f32 %v1205, 1e-12
    %v1208 = vrsqrt.pop %v1206
    %v1209 = vmul.f32 %v1208, %v1206
    %v1210 = vmul.f32 %v1209, %v1208
    %v1211 = vmul.f32 0.5, %v1210
    %v1212 = vsub.f32 1.5, %v1211
    %v1213 = vmul.f32 %v1208, %v1212
    %vm1214 = vweird.f32 %v1206
    %vm1215 = vweird.f32 %v1208
    %vm1216 = vmor %vm1214, %vm1215
    %v1217 = vsel %vm1216, %v1208, %v1213
    %v1218 = vrsqrt.pop %v1207
    %v1219 = vmul.f32 %v1218, %v1207
    %v1220 = vmul.f32 %v1219, %v1218
    %v1221 = vmul.f32 0.5, %v1220
    %v1222 = vsub.f32 1.5, %v1221
    %v1223 = vmul.f32 %v1218, %v1222
    %vm1224 = vweird.f32 %v1207
    %vm1225 = vweird.f32 %v1218
    %vm1226 = vmor %vm1224, %vm1225
    %v1227 = vsel %vm1226, %v1218, %v1223
    %v1228 = vmul.f32 %v1194, %v1217
    %v1229 = vmul.f32 %v1195, %v1227
    %v1230 = vperm.slane %v769, 4
    %v1231 = vmul.f32 %v1228, %v1230
    %v1232 = vmul.f32 %v1229, %v1230
    %v1233 = vperm.slane %v769, 5
    %v1234 = vadd.f32 %v1231, %v1233
    %v1235 = vadd.f32 %v1232, %v1233
    %v1236 = vpack.c.bf16 %v1235, %v1234
    %v1237 = vperm.slane %v769, 2
    %v1238 = vunpack.c.h.b16 %v764
    %v1239 = vunpack.c.h.b16 %v765
    %v1240 = vunpack.c.h.b16 %v766
    %v1241 = vunpack.c.h.b16 %v767
    %v1242 = vpack.c.b16 %v1239, %v1238
    %v1243 = vpack.c.b16 %v1241, %v1240
    %v1247 = vsel %vm151, %v1236, 0
    %1249 = vmatpush.bf16.msra.mxu0 0
    %1250 = vmatpush.bf16.msra.mxu0 0
    %1251 = vmatpush.bf16.msra.mxu0 0
    %1252 = vmatpush.bf16.msra.mxu0 0
    %1253 = vmatpush.bf16.msra.mxu0 0
    %1254 = vmatpush.bf16.msra.mxu0 0
    %1255 = vmatpush.bf16.msra.mxu0 %v1243
    %1256 = vmatpush.bf16.msra.mxu0 %v1242
    %1257 = vmatmul.bf16.gmra.mxu0 %v1247
    %v1258 = vpop.f32.mrf.mxu0
    %v1259 = vadd.f32 %v1237, %v1258
    %v1260 = vpop.f32.mrf.mxu0
    %v1261 = vadd.f32 %v1237, %v1260
    %1262 = vdwg.mxu0
    %v1263 = vmul.f32 %v1259, %v1259
    %v1264 = vmul.f32 %v1261, %v1261
    %v1265 = vmul.f32 %v1259, %v1263
    %v1266 = vmul.f32 %v1261, %v1264
    %v1267 = vmul.f32 %v1265, 0.044715
    %v1268 = vmul.f32 %v1266, 0.044715
    %v1269 = vadd.f32 %v1259, %v1267
    %v1270 = vadd.f32 %v1261, %v1268
    %v1271 = vmul.f32 %v1269, 0.7978846
    %v1272 = vmul.f32 %v1270, 0.7978846
    %v1273 = vtanh.pop %v1271
    %v1274 = vtanh.pop %v1272
    %v1275 = vadd.f32 %v1273, 1.0
    %v1276 = vadd.f32 %v1274, 1.0
    %v1277 = vmul.f32 %v1275, 0.5
    %v1278 = vmul.f32 %v1276, 0.5
    %v1279 = vmul.f32 %v1259, %v1277
    %v1280 = vmul.f32 %v1261, %v1278
    %v1281 = vpack.c.bf16 %v1280, %v1279
    %s1282 = scalar_lea.vmem %s3, 32
    %v1283 = vld [vmem:[%s1282] sm:$0xf]
    %v1284 = vld [vmem:[%s1282 + $0x4] sm:$0xf]
    %v1285 = vld [vmem:[%s1282 + $0x8] sm:$0xf]
    %v1286 = vld [vmem:[%s1282 + $0xc] sm:$0xf]
    %v1287 = vld [vmem:[%s1282 + $0x10] sm:$0xf]
    %v1288 = vld [vmem:[%s1282 + $0x14] sm:$0xf]
    %v1289 = vld [vmem:[%s1282 + $0x18] sm:$0xf]
    %v1290 = vld [vmem:[%s1282 + $0x1c] sm:$0xf]
    %v1291 = vperm.slane %v769, 3
    %v1300 = vunpack.c.l.b16 %v1283
    %v1301 = vunpack.c.l.b16 %v1284
    %v1302 = vunpack.c.l.b16 %v1285
    %v1303 = vunpack.c.l.b16 %v1286
    %v1304 = vunpack.c.l.b16 %v1287
    %v1305 = vunpack.c.l.b16 %v1288
    %v1306 = vunpack.c.l.b16 %v1289
    %v1307 = vunpack.c.l.b16 %v1290
    %v1308 = vpack.c.b16 %v1301, %v1300
    %v1309 = vpack.c.b16 %v1303, %v1302
    %v1310 = vpack.c.b16 %v1305, %v1304
    %v1311 = vpack.c.b16 %v1307, %v1306
    %v1317 = vsel %vm693, %v1281, 0
    %1319 = vmatpush.bf16.msra.mxu0 0
    %1320 = vmatpush.bf16.msra.mxu0 0
    %1321 = vmatpush.bf16.msra.mxu0 0
    %1322 = vmatpush.bf16.msra.mxu0 0
    %1323 = vmatpush.bf16.msra.mxu0 %v1311
    %1324 = vmatpush.bf16.msra.mxu0 %v1310
    %1325 = vmatpush.bf16.msra.mxu0 %v1309
    %1326 = vmatpush.bf16.msra.mxu0 %v1308
    %1327 = vmatmul.bf16.gmra.mxu0 %v1317
    %v1328 = vpop.f32.mrf.mxu0
    %v1329 = vadd.f32 %v1291, %v1328
    %v1330 = vpop.f32.mrf.mxu0
    %v1331 = vadd.f32 %v1291, %v1330
    %1332 = vdwg.mxu0
    %v1333 = vadd.f32 %v1234, %v1329
    %v1334 = vadd.f32 %v1235, %v1331
    %v1335 = vsel %vm151, %v1333, 0.0
    %1336 = vadd.xlane.f32.xlu0 %v1335
    %v1337 = vpop.xlane.xlu0 %1336
    %v1338 = vsel %vm151, %v1334, 0.0
    %1339 = vadd.xlane.f32.xlu0 %v1338
    %v1340 = vpop.xlane.xlu0 %1339
    %v1341 = vmul.f32 %v1337, %v569
    %v1342 = vmul.f32 %v1340, %v569
    %v1343 = vsub.f32 %v1333, %v1341
    %v1344 = vsub.f32 %v1334, %v1342
    %v1345 = vmul.f32 %v1343, %v1343
    %v1346 = vmul.f32 %v1344, %v1344
    %v1347 = vsel %vm151, %v1345, 0.0
    %1348 = vadd.xlane.f32.xlu0 %v1347
    %v1349 = vpop.xlane.xlu0 %1348
    %v1350 = vsel %vm151, %v1346, 0.0
    %1351 = vadd.xlane.f32.xlu0 %v1350
    %v1352 = vpop.xlane.xlu0 %1351
    %v1353 = vmul.f32 %v1349, %v569
    %v1354 = vmul.f32 %v1352, %v569
    %v1355 = vadd.f32 %v1353, 1e-12
    %v1356 = vadd.f32 %v1354, 1e-12
    %v1357 = vrsqrt.pop %v1355
    %v1358 = vmul.f32 %v1357, %v1355
    %v1359 = vmul.f32 %v1358, %v1357
    %v1360 = vmul.f32 0.5, %v1359
    %v1361 = vsub.f32 1.5, %v1360
    %v1362 = vmul.f32 %v1357, %v1361
    %vm1363 = vweird.f32 %v1355
    %vm1364 = vweird.f32 %v1357
    %vm1365 = vmor %vm1363, %vm1364
    %v1366 = vsel %vm1365, %v1357, %v1362
    %v1367 = vrsqrt.pop %v1356
    %v1368 = vmul.f32 %v1367, %v1356
    %v1369 = vmul.f32 %v1368, %v1367
    %v1370 = vmul.f32 0.5, %v1369
    %v1371 = vsub.f32 1.5, %v1370
    %v1372 = vmul.f32 %v1367, %v1371
    %vm1373 = vweird.f32 %v1356
    %vm1374 = vweird.f32 %v1367
    %vm1375 = vmor %vm1373, %vm1374
    %v1376 = vsel %vm1375, %v1367, %v1372
    %v1377 = vmul.f32 %v1343, %v1366
    %v1378 = vmul.f32 %v1344, %v1376
    %v1379 = vperm.slane %v769, 6
    %v1380 = vmul.f32 %v1377, %v1379
    %v1381 = vmul.f32 %v1378, %v1379
    %v1382 = vperm.slane %v769, 7
    %v1383 = vadd.f32 %v1380, %v1382
    %v1384 = vadd.f32 %v1381, %v1382
    %v1385 = vld [vmem:[%s5] sm:$0xf]
    %v1386 = vld [vmem:[%s5 + $0x4] sm:$0xf]
    %v1387 = vld [vmem:[%s5 + $0x8] sm:$0xf]
    %v1388 = vld [vmem:[%s5 + $0xc] sm:$0xf]
    %v1389 = vld [vmem:[%s5 + $0x10] sm:$0x1]
    %v1390 = vunpack.c.l.bf16 %v1389
    %v1391 = vtanh.pop %v1383
    %v1392 = vtanh.pop %v1384
    %v1393 = vpack.c.bf16 %v1392, %v1391
    %v1398 = vunpack.c.l.b16 %v1385
    %v1399 = vunpack.c.l.b16 %v1386
    %v1400 = vunpack.c.l.b16 %v1387
    %v1401 = vunpack.c.l.b16 %v1388
    %v1402 = vpack.c.b16 %v1399, %v1398
    %v1403 = vpack.c.b16 %v1401, %v1400
    %v1407 = vsel %vm151, %v1393, 0
    %1409 = vmatpush.bf16.msra.mxu0 0
    %1410 = vmatpush.bf16.msra.mxu0 0
    %1411 = vmatpush.bf16.msra.mxu0 0
    %1412 = vmatpush.bf16.msra.mxu0 0
    %1413 = vmatpush.bf16.msra.mxu0 0
    %1414 = vmatpush.bf16.msra.mxu0 0
    %1415 = vmatpush.bf16.msra.mxu0 %v1403
    %1416 = vmatpush.bf16.msra.mxu0 %v1402
    %1417 = vmatmul.bf16.gmra.mxu0 %v1407
    %v1418 = vpop.f32.mrf.mxu0
    %v1419 = vadd.f32 0.0, %v1418
    %v1420 = vpop.f32.mrf.mxu0
    %v1421 = vadd.f32 0.0, %v1420
    %1422 = vdwg.mxu0
    %v1423 = vmul.u32 %v123, 8
    %vm1424 = vcmp.eq.s32.totalorder %v28, %v1423
    %v1425 = vsel %vm1424, 1.0, 0.0
    %v1426 = vperm.slane %v1390, 0
    %v1428 = vsel %vm198, %v1425, 0
    %1430 = vmatpush.msra.mxu0 0.0
    %1431 = vmatpush.msra.mxu0 0.0
    %1432 = vmatpush.msra.mxu0 0.0
    %1433 = vmatpush.msra.mxu0 0.0
    %1434 = vmatpush.msra.mxu0 0.0
    %1435 = vmatpush.msra.mxu0 0.0
    %1436 = vmatpush.msra.mxu0 0.0
    %1437 = vmatpush.msra.mxu0 0.0
    %1438 = vmatpush.msra.mxu0 0.0
    %1439 = vmatpush.msra.mxu0 0.0
    %1440 = vmatpush.msra.mxu0 0.0
    %1441 = vmatpush.msra.mxu0 0.0
    %1442 = vmatpush.msra.mxu0 0.0
    %1443 = vmatpush.msra.mxu0 0.0
    %1444 = vmatpush.msra.mxu0 %v1421
    %1445 = vmatpush.msra.mxu0 %v1419
    %1446 = vmatmul.f32.gmra.mxu0 %v1428
    %v1447 = vpop.f32.mrf.mxu0
    %v1448 = vadd.f32 %v1426, %v1447
    %1449 = vdwg.mxu0
    %1450 = vst [vmem:[#allocation2] sm:$0xff] %v1448
    // Predicated region
    $region26: #{tpu_custom_call.1} parent=1 // pred_check
      _
    $region27: #{tpu_custom_call.1} parent=1 // pred_check_branch
      %1452 = sbr.rel (0) target = $region29
    $region28: #{tpu_custom_call.1} parent=1 // pred_region
      %1454 = vsyncadd [#allocation3], 0
      %s1456 = sshll.u32 [#allocation2], 4
      %s1457 = int_to_ptr.vmem [resolvable:$true] %s1456
      %s1458 = sshll.u32 %s6, 4
      %s1459 = int_to_ptr.hbm [resolvable:$true] %s1458
      %1461 = dma.vmem_to_hbm [thread:$0]  %s1457, 128, %s1459, [#allocation3]
    $region29: #{tpu_custom_call.1} parent=1 // pred_fallthru
      _
    // Predicated region
    $region30: #{tpu_custom_call.1} parent=1 // pred_check
      _
    $region31: #{tpu_custom_call.1} parent=1 // pred_check_branch
      %1463 = sbr.rel (0) target = $region33
    $region32: #{tpu_custom_call.1} parent=1 // pred_region
      %1465 = dma.done [#allocation3], 128
    $region33: #{tpu_custom_call.1} parent=1 // pred_fallthru
      _
    %1466 = vsyncpa [#allocation3], 1

</llo_original>
